<compile_context>
chip_gen: v7x
topology: tpu7x:2x2x1
jax: 0.10.0
libtpu: 0.0.40
codegen_flags: <defaults>
</compile_context>

<pallas_src>
import math

import jax
import jax.numpy as jnp
import numpy as np
from jax import lax
from jax.experimental import pallas as pl
from jax.experimental.pallas import tpu as pltpu

# ---- small model config (consistent with the module's forward) ----
T = 8            # sequence length
B = 2            # batch
D = 32           # embedding_dim
F = 64           # ffn_embedding_dim
H = 4            # num_attention_heads
DH = D // H      # head dim
N = T * B        # total rows, natural (time, batch) order: row = t*B + b
LANE = 128       # TPU lane width; every packed column block is LANE wide
LN_EPS = 1e-5

DH_SH = DH.bit_length() - 1   # log2(DH) = 3   (power-of-two -> cheap shifts)
N_SH = N.bit_length() - 1     # log2(N)  = 4


def _layer_norm(v, colsum, g, b):
    """LayerNorm over the D data columns of an (N, LANE) tile.

    colsum is a (LANE, LANE) constant with 1/D in rows 0:D (zero elsewhere), so
    the two dots produce the per-row mean and E[x^2] already broadcast across
    all lanes (reductions ride the idle MXU, padding / ones columns excluded).
    g/b are pre-broadcast (N, LANE) tiles whose padding columns are zero, which
    also zeroes the padding columns of the output (ln1_b carries a 1.0 at
    column D to re-create the ones-column used for the folded fc1/fc2 biases).
    """
    mu = jnp.dot(v, colsum, preferred_element_type=jnp.float32)
    ev2 = jnp.dot(v * v, colsum, preferred_element_type=jnp.float32)
    var = ev2 - mu * mu
    return (v - mu) * lax.rsqrt(var + LN_EPS) * g + b


def encoder_layer_kernel(x_ref, w_ref, vs_ref, o_ref):
    """x_ref : (N, LANE)      rows in (time, batch) order; data cols 0:D, col D == 1
       w_ref : (LANE, 7*LANE) weight slab: Q | K | V | O | FC1 | FC2 | LN-colsum
       vs_ref: (5, N, LANE)   pre-broadcast bo, ln1_g, ln1_b, ln2_g, ln2_b
       o_ref : (N, LANE)      output; data in cols 0:D, zeros elsewhere."""
    xf = x_ref[...]

    # --- tiny constant masks, built once from 2-D iota (bit ops only) ---
    jr = lax.broadcasted_iota(jnp.int32, (H * N, LANE), 0)
    jc = lax.broadcasted_iota(jnp.int32, (H * N, LANE), 1)
    headmask = ((jc >> DH_SH) == (jr >> N_SH)).astype(jnp.float32)   # (H*N, LANE)
    er = lax.broadcasted_iota(jnp.int32, (H * N, H * N), 0)
    ec = lax.broadcasted_iota(jnp.int32, (H * N, H * N), 1)
    blkdiag = ((er >> N_SH) == (ec >> N_SH)).astype(jnp.float32)     # (H*N, H*N)
    qr = lax.broadcasted_iota(jnp.int32, (N, H * N), 0)
    kc = lax.broadcasted_iota(jnp.int32, (N, H * N), 1)
    same_batch = (qr & (B - 1)) == (kc & (B - 1))                    # (N, H*N)

    # --- fused QKV projection; 1/sqrt(DH) and biases folded into the slab ---
    qkv = jnp.dot(xf, w_ref[:, 0:3 * LANE], preferred_element_type=jnp.float32)
    q = qkv[:, 0:LANE]
    k = qkv[:, LANE:2 * LANE]
    v = qkv[:, 2 * LANE:3 * LANE]

    # --- replicate K/V across heads along sublanes; row-block h keeps only
    #     head-h columns, so one full-width matmul covers all heads at once ---
    k4 = jnp.concatenate([k] * H, axis=0) * headmask                 # (H*N, LANE)
    v4 = jnp.concatenate([v] * H, axis=0) * headmask                 # (H*N, LANE)

    # --- scores (N, H*N): column j = head*N + key_row ---
    s = lax.dot_general(q, k4, dimension_numbers=(((1,), (1,)), ((), ())),
                        preferred_element_type=jnp.float32)
    s = jnp.where(same_batch, s, jnp.float32(-1e30))  # cross-batch keys -> prob 0
    m = jnp.max(s, axis=-1, keepdims=True)            # per-row constant: softmax-safe
    e = jnp.exp(s - m)
    denom = jnp.dot(e, blkdiag, preferred_element_type=jnp.float32)  # per-head sums
    p = e / denom                                                    # exact softmax
    ctx = jnp.dot(p, v4, preferred_element_type=jnp.float32)         # (N, LANE)

    # --- out projection + residual + self_attn_layer_norm (dropout1 = id) ---
    attn = jnp.dot(ctx, w_ref[:, 3 * LANE:4 * LANE],
                   preferred_element_type=jnp.float32)
    colsum = w_ref[:, 6 * LANE:7 * LANE]
    x1 = _layer_norm(xf + attn + vs_ref[0], colsum, vs_ref[1], vs_ref[2])

    # --- FFN + residual + final_layer_norm (dropout2/3 = id); fc1/fc2 biases
    #     ride the ones-column planted by ln1_b / the fc1 slab row ---
    hdn = jnp.maximum(jnp.dot(x1, w_ref[:, 4 * LANE:5 * LANE],
                              preferred_element_type=jnp.float32), 0.0)
    ffn = jnp.dot(hdn, w_ref[:, 5 * LANE:6 * LANE],
                  preferred_element_type=jnp.float32)
    x2 = _layer_norm(x1 + ffn, colsum, vs_ref[3], vs_ref[4])

    o_ref[...] = x2


@jax.jit
def transformer_encoder_layer(x_tbd, w_slab, v_slab):
    """x_tbd: (T, B, D) float32 -> (T, B, D). Single gridless pallas_call."""
    x2d = x_tbd.reshape(N, D)
    # lane-dense (N, 128) input: data | ones-column (folded biases) | zeros
    xpad = jnp.concatenate(
        [x2d, jnp.ones((N, 1), x2d.dtype), jnp.zeros((N, LANE - D - 1), x2d.dtype)],
        axis=1)
    vmem = lambda: pl.BlockSpec(memory_space=pltpu.MemorySpace.VMEM)
    out = pl.pallas_call(
        encoder_layer_kernel,
        out_shape=jax.ShapeDtypeStruct((N, LANE), jnp.float32),
        in_specs=[vmem(), vmem(), vmem()],
        out_specs=vmem(),
    )(xpad, w_slab, v_slab)
    return out[:, :D].reshape(T, B, D)


def init_params(key):
    """Raw parameters with PyTorch-equivalent semantics. Linear weights are
    stored pre-transposed as (fan_in, fan_out) so y = x @ W + b."""
    ks = jax.random.split(key, 16)
    std = 0.02

    def lin(k, fi, fo):
        return jax.random.normal(k, (fi, fo), jnp.float32) * std

    def vec(k, n):
        return jax.random.normal(k, (n,), jnp.float32) * std

    return {
        "wq": lin(ks[0], D, D), "bq": vec(ks[1], D),
        "wk": lin(ks[2], D, D), "bk": vec(ks[3], D),
        "wv": lin(ks[4], D, D), "bv": vec(ks[5], D),
        "wo": lin(ks[6], D, D), "bo": vec(ks[7], D),
        "ln1_g": 1.0 + 0.1 * vec(ks[8], D), "ln1_b": 0.1 * vec(ks[9], D),
        "w1": lin(ks[10], D, F), "b1": vec(ks[11], F),
        "w2": lin(ks[12], F, D), "b2": vec(ks[13], D),
        "ln2_g": 1.0 + 0.1 * vec(ks[14], D), "ln2_b": 0.1 * vec(ks[15], D),
    }


def pack_params(p):
    """Pack parameters into a lane-aligned (128, 7*128) weight slab and a
    (5, N, 128) pre-broadcast bias/LN slab.

    Weight slab column blocks (each 128 lanes wide, zero-padded):
      [0:128)   Wq*scale (rows 0:D) + bq*scale (row D)   -- input col D is 1.0
      [128:256) Wk + bk (row D)
      [256:384) Wv + bv (row D)
      [384:512) Wo                  (bo added explicitly, ctx has no ones col)
      [512:640) W1 + b1 (row D), plus 1.0 at [D, F] to re-create a ones column
      [640:768) W2 + b2 (row F)
      [768:896) LayerNorm column-sum matrix: 1/D in rows 0:D
    """
    scale = 1.0 / math.sqrt(DH)
    w = jnp.zeros((LANE, 7 * LANE), jnp.float32)
    w = w.at[0:D, 0:D].set(p["wq"] * scale)
    w = w.at[D, 0:D].set(p["bq"] * scale)
    w = w.at[0:D, LANE:LANE + D].set(p["wk"])
    w = w.at[D, LANE:LANE + D].set(p["bk"])
    w = w.at[0:D, 2 * LANE:2 * LANE + D].set(p["wv"])
    w = w.at[D, 2 * LANE:2 * LANE + D].set(p["bv"])
    w = w.at[0:D, 3 * LANE:3 * LANE + D].set(p["wo"])
    w = w.at[0:D, 4 * LANE:4 * LANE + F].set(p["w1"])
    w = w.at[D, 4 * LANE:4 * LANE + F].set(p["b1"])
    w = w.at[D, 4 * LANE + F].set(1.0)              # ones-column creator in hdn
    w = w.at[0:F, 5 * LANE:5 * LANE + D].set(p["w2"])
    w = w.at[F, 5 * LANE:5 * LANE + D].set(p["b2"])
    w = w.at[0:D, 6 * LANE:7 * LANE].set(1.0 / D)   # LN column-sum / broadcast

    vs = jnp.zeros((5, N, LANE), jnp.float32)
    vs = vs.at[0, :, 0:D].set(jnp.broadcast_to(p["bo"], (N, D)))
    vs = vs.at[1, :, 0:D].set(jnp.broadcast_to(p["ln1_g"], (N, D)))
    vs = vs.at[2, :, 0:D].set(jnp.broadcast_to(p["ln1_b"], (N, D)))
    vs = vs.at[2, :, D].set(1.0)                    # ones-column through LN1
    vs = vs.at[3, :, 0:D].set(jnp.broadcast_to(p["ln2_g"], (N, D)))
    vs = vs.at[4, :, 0:D].set(jnp.broadcast_to(p["ln2_b"], (N, D)))
    return w, vs


def _ln_ref(v, g, b):
    mu = jnp.mean(v, axis=-1, keepdims=True)
    var = jnp.mean((v - mu) ** 2, axis=-1, keepdims=True)
    return (v - mu) * lax.rsqrt(var + LN_EPS) * g + b


def reference_layer(x_tbd, p):
    """Pure-JAX reference of the post-norm forward (eval mode)."""
    x = jnp.transpose(x_tbd, (1, 0, 2))  # (B, T, D)
    scale = 1.0 / math.sqrt(DH)
    q = (x @ p["wq"] + p["bq"]) * scale
    k = x @ p["wk"] + p["bk"]
    v = x @ p["wv"] + p["bv"]
    qh = q.reshape(B, T, H, DH).transpose(0, 2, 1, 3)
    kh = k.reshape(B, T, H, DH).transpose(0, 2, 1, 3)
    vh = v.reshape(B, T, H, DH).transpose(0, 2, 1, 3)
    s = jnp.einsum("bhtd,bhsd->bhts", qh, kh)
    pa = jax.nn.softmax(s, axis=-1)
    ctx = jnp.einsum("bhts,bhsd->bhtd", pa, vh).transpose(0, 2, 1, 3).reshape(B, T, D)
    attn_out = ctx @ p["wo"] + p["bo"]
    x1 = _ln_ref(x + attn_out, p["ln1_g"], p["ln1_b"])
    hdn = jnp.maximum(x1 @ p["w1"] + p["b1"], 0.0)
    out = hdn @ p["w2"] + p["b2"]
    x2 = _ln_ref(x1 + out, p["ln2_g"], p["ln2_b"])
    return jnp.transpose(x2, (1, 0, 2))


if __name__ == "__main__":
    key = jax.random.PRNGKey(0)
    k_x, k_p = jax.random.split(key)
    x = jax.random.normal(k_x, (T, B, D), jnp.float32)  # (seq, batch, embed)
    params = init_params(k_p)
    w_slab, v_slab = pack_params(params)

    y = jax.block_until_ready(transformer_encoder_layer(x, w_slab, v_slab))
    y_ref = jax.block_until_ready(reference_layer(x, params))

    # Tolerance accommodates MXU f32 matmul precision differences vs. XLA;
    # the softmax normalizer now uses an exact divide (no approx reciprocal).
    np.testing.assert_allclose(np.asarray(y), np.asarray(y_ref),
                               atol=1e-3, rtol=1e-3)

    # TODO(synk): dropout1/2/3 and attention dropout are identity in eval mode;
    # attn_mask / key_padding_mask are None and attention weights are not
    # returned (need_weights=False), so only x is produced.
    print("KERNEL_OK")
</pallas_src>

<mosaic_0001>
module attributes {stable_mosaic.version = 11 : i64} {
  func.func @encoder_layer_kernel(%arg0: memref<16x128xf32, #tpu.memory_space<vmem>>, %arg1: memref<128x896xf32, #tpu.memory_space<vmem>>, %arg2: memref<5x16x128xf32, #tpu.memory_space<vmem>>, %arg3: memref<16x128xf32, #tpu.memory_space<vmem>>) attributes {dimension_semantics = [], scalar_prefetch = 0 : i64, scratch_operands = 0 : i64, tpu.core_type = #tpu.core_type<tc>} {
    %c0 = arith.constant 0 : index
    %c0_0 = arith.constant 0 : index
    %0 = vector.load %arg0[%c0, %c0_0] : memref<16x128xf32, #tpu.memory_space<vmem>>, vector<16x128xf32>
    %1 = tpu.iota {dimensions = array<i32: 0>} : vector<64x128xi32>
    %2 = tpu.iota {dimensions = array<i32: 1>} : vector<64x128xi32>
    %c3_i32 = arith.constant 3 : i32
    %3 = vector.broadcast %c3_i32 : i32 to vector<64x128xi32>
    %4 = arith.shrsi %2, %3 : vector<64x128xi32>
    %c4_i32 = arith.constant 4 : i32
    %5 = vector.broadcast %c4_i32 : i32 to vector<64x128xi32>
    %6 = arith.shrsi %1, %5 : vector<64x128xi32>
    %7 = arith.cmpi eq, %4, %6 : vector<64x128xi32>
    %8 = arith.extui %7 : vector<64x128xi1> to vector<64x128xi32>
    %9 = arith.sitofp %8 : vector<64x128xi32> to vector<64x128xf32>
    %10 = tpu.iota {dimensions = array<i32: 0>} : vector<64x64xi32>
    %11 = tpu.iota {dimensions = array<i32: 1>} : vector<64x64xi32>
    %c4_i32_1 = arith.constant 4 : i32
    %12 = vector.broadcast %c4_i32_1 : i32 to vector<64x64xi32>
    %13 = arith.shrsi %10, %12 : vector<64x64xi32>
    %c4_i32_2 = arith.constant 4 : i32
    %14 = vector.broadcast %c4_i32_2 : i32 to vector<64x64xi32>
    %15 = arith.shrsi %11, %14 : vector<64x64xi32>
    %16 = arith.cmpi eq, %13, %15 : vector<64x64xi32>
    %17 = arith.extui %16 : vector<64x64xi1> to vector<64x64xi32>
    %18 = arith.sitofp %17 : vector<64x64xi32> to vector<64x64xf32>
    %19 = tpu.iota {dimensions = array<i32: 0>} : vector<16x64xi32>
    %20 = tpu.iota {dimensions = array<i32: 1>} : vector<16x64xi32>
    %c1_i32 = arith.constant 1 : i32
    %21 = vector.broadcast %c1_i32 : i32 to vector<16x64xi32>
    %22 = arith.andi %19, %21 : vector<16x64xi32>
    %c1_i32_3 = arith.constant 1 : i32
    %23 = vector.broadcast %c1_i32_3 : i32 to vector<16x64xi32>
    %24 = arith.andi %20, %23 : vector<16x64xi32>
    %25 = arith.cmpi eq, %22, %24 : vector<16x64xi32>
    %c0_4 = arith.constant 0 : index
    %c0_5 = arith.constant 0 : index
    %26 = vector.load %arg1[%c0_4, %c0_5] : memref<128x896xf32, #tpu.memory_space<vmem>>, vector<128x384xf32>
    %cst = arith.constant dense<0.000000e+00> : vector<16x384xf32>
    %27 = tpu.matmul %0, %26, %cst {dimension_numbers = #tpu.dot_dimension_numbers<[1], [0], [0], [1], [0, 0, 1, 1], [], []>} : vector<16x128xf32>, vector<128x384xf32>, vector<16x384xf32> -> vector<16x384xf32>
    %28 = vector.extract_strided_slice %27 {offsets = [0, 0], sizes = [16, 128], strides = [1, 1]} : vector<16x384xf32> to vector<16x128xf32>
    %29 = vector.extract_strided_slice %27 {offsets = [0, 128], sizes = [16, 128], strides = [1, 1]} : vector<16x384xf32> to vector<16x128xf32>
    %30 = vector.extract_strided_slice %27 {offsets = [0, 256], sizes = [16, 128], strides = [1, 1]} : vector<16x384xf32> to vector<16x128xf32>
    %31 = tpu.concatenate %29, %29, %29, %29 in 0 : vector<16x128xf32>, vector<16x128xf32>, vector<16x128xf32>, vector<16x128xf32> -> vector<64x128xf32>
    %32 = arith.mulf %31, %9 : vector<64x128xf32>
    %33 = tpu.concatenate %30, %30, %30, %30 in 0 : vector<16x128xf32>, vector<16x128xf32>, vector<16x128xf32>, vector<16x128xf32> -> vector<64x128xf32>
    %34 = arith.mulf %33, %9 : vector<64x128xf32>
    %cst_6 = arith.constant dense<0.000000e+00> : vector<16x64xf32>
    %35 = tpu.matmul %28, %32, %cst_6 {dimension_numbers = #tpu.dot_dimension_numbers<[1], [1], [0], [0], [0, 0, 1, 0], [], []>} : vector<16x128xf32>, vector<64x128xf32>, vector<16x64xf32> -> vector<16x64xf32>
    %cst_7 = arith.constant -1.000000e+30 : f32
    %36 = vector.broadcast %cst_7 : f32 to vector<16x64xf32>
    %37 = arith.select %25, %35, %36 : vector<16x64xi1>, vector<16x64xf32>
    %cst_8 = arith.constant dense<0xFF800000> : vector<16xf32>
    %38 = vector.multi_reduction <maximumf>, %37, %cst_8 [1] : vector<16x64xf32> to vector<16xf32>
    %39 = vector.shape_cast %38 : vector<16xf32> to vector<16x1xf32>
    %40 = vector.broadcast %39 : vector<16x1xf32> to vector<16x64xf32>
    %41 = arith.subf %37, %40 : vector<16x64xf32>
    %42 = math.exp %41 : vector<16x64xf32>
    %cst_9 = arith.constant dense<0.000000e+00> : vector<16x64xf32>
    %43 = tpu.matmul %42, %18, %cst_9 {dimension_numbers = #tpu.dot_dimension_numbers<[1], [0], [0], [1], [0, 0, 1, 1], [], []>} : vector<16x64xf32>, vector<64x64xf32>, vector<16x64xf32> -> vector<16x64xf32>
    %44 = arith.divf %42, %43 : vector<16x64xf32>
    %cst_10 = arith.constant dense<0.000000e+00> : vector<16x128xf32>
    %45 = tpu.matmul %44, %34, %cst_10 {dimension_numbers = #tpu.dot_dimension_numbers<[1], [0], [0], [1], [0, 0, 1, 1], [], []>} : vector<16x64xf32>, vector<64x128xf32>, vector<16x128xf32> -> vector<16x128xf32>
    %c0_11 = arith.constant 0 : index
    %c384 = arith.constant 384 : index
    %46 = vector.load %arg1[%c0_11, %c384] : memref<128x896xf32, #tpu.memory_space<vmem>>, vector<128x128xf32>
    %cst_12 = arith.constant dense<0.000000e+00> : vector<16x128xf32>
    %47 = tpu.matmul %45, %46, %cst_12 {dimension_numbers = #tpu.dot_dimension_numbers<[1], [0], [0], [1], [0, 0, 1, 1], [], []>} : vector<16x128xf32>, vector<128x128xf32>, vector<16x128xf32> -> vector<16x128xf32>
    %c0_13 = arith.constant 0 : index
    %c768 = arith.constant 768 : index
    %48 = vector.load %arg1[%c0_13, %c768] : memref<128x896xf32, #tpu.memory_space<vmem>>, vector<128x128xf32>
    %49 = arith.addf %0, %47 : vector<16x128xf32>
    %c0_14 = arith.constant 0 : index
    %c0_15 = arith.constant 0 : index
    %c0_16 = arith.constant 0 : index
    %50 = vector.load %arg2[%c0_14, %c0_15, %c0_16] : memref<5x16x128xf32, #tpu.memory_space<vmem>>, vector<1x16x128xf32>
    %51 = vector.shape_cast %50 : vector<1x16x128xf32> to vector<16x128xf32>
    %52 = arith.addf %49, %51 : vector<16x128xf32>
    %c1 = arith.constant 1 : index
    %c0_17 = arith.constant 0 : index
    %c0_18 = arith.constant 0 : index
    %53 = vector.load %arg2[%c1, %c0_17, %c0_18] : memref<5x16x128xf32, #tpu.memory_space<vmem>>, vector<1x16x128xf32>
    %54 = vector.shape_cast %53 : vector<1x16x128xf32> to vector<16x128xf32>
    %c2 = arith.constant 2 : index
    %c0_19 = arith.constant 0 : index
    %c0_20 = arith.constant 0 : index
    %55 = vector.load %arg2[%c2, %c0_19, %c0_20] : memref<5x16x128xf32, #tpu.memory_space<vmem>>, vector<1x16x128xf32>
    %56 = vector.shape_cast %55 : vector<1x16x128xf32> to vector<16x128xf32>
    %cst_21 = arith.constant dense<0.000000e+00> : vector<16x128xf32>
    %57 = tpu.matmul %52, %48, %cst_21 {dimension_numbers = #tpu.dot_dimension_numbers<[1], [0], [0], [1], [0, 0, 1, 1], [], []>} : vector<16x128xf32>, vector<128x128xf32>, vector<16x128xf32> -> vector<16x128xf32>
    %58 = arith.mulf %52, %52 : vector<16x128xf32>
    %cst_22 = arith.constant dense<0.000000e+00> : vector<16x128xf32>
    %59 = tpu.matmul %58, %48, %cst_22 {dimension_numbers = #tpu.dot_dimension_numbers<[1], [0], [0], [1], [0, 0, 1, 1], [], []>} : vector<16x128xf32>, vector<128x128xf32>, vector<16x128xf32> -> vector<16x128xf32>
    %60 = arith.mulf %57, %57 : vector<16x128xf32>
    %61 = arith.subf %59, %60 : vector<16x128xf32>
    %62 = arith.subf %52, %57 : vector<16x128xf32>
    %cst_23 = arith.constant 9.99999974E-6 : f32
    %63 = vector.broadcast %cst_23 : f32 to vector<16x128xf32>
    %64 = arith.addf %61, %63 : vector<16x128xf32>
    %65 = math.rsqrt %64 : vector<16x128xf32>
    %66 = arith.mulf %62, %65 : vector<16x128xf32>
    %67 = arith.mulf %66, %54 : vector<16x128xf32>
    %68 = arith.addf %67, %56 : vector<16x128xf32>
    %c0_24 = arith.constant 0 : index
    %c512 = arith.constant 512 : index
    %69 = vector.load %arg1[%c0_24, %c512] : memref<128x896xf32, #tpu.memory_space<vmem>>, vector<128x128xf32>
    %cst_25 = arith.constant dense<0.000000e+00> : vector<16x128xf32>
    %70 = tpu.matmul %68, %69, %cst_25 {dimension_numbers = #tpu.dot_dimension_numbers<[1], [0], [0], [1], [0, 0, 1, 1], [], []>} : vector<16x128xf32>, vector<128x128xf32>, vector<16x128xf32> -> vector<16x128xf32>
    %cst_26 = arith.constant 0.000000e+00 : f32
    %71 = vector.broadcast %cst_26 : f32 to vector<16x128xf32>
    %72 = arith.maximumf %70, %71 : vector<16x128xf32>
    %c0_27 = arith.constant 0 : index
    %c640 = arith.constant 640 : index
    %73 = vector.load %arg1[%c0_27, %c640] : memref<128x896xf32, #tpu.memory_space<vmem>>, vector<128x128xf32>
    %cst_28 = arith.constant dense<0.000000e+00> : vector<16x128xf32>
    %74 = tpu.matmul %72, %73, %cst_28 {dimension_numbers = #tpu.dot_dimension_numbers<[1], [0], [0], [1], [0, 0, 1, 1], [], []>} : vector<16x128xf32>, vector<128x128xf32>, vector<16x128xf32> -> vector<16x128xf32>
    %75 = arith.addf %68, %74 : vector<16x128xf32>
    %c3 = arith.constant 3 : index
    %c0_29 = arith.constant 0 : index
    %c0_30 = arith.constant 0 : index
    %76 = vector.load %arg2[%c3, %c0_29, %c0_30] : memref<5x16x128xf32, #tpu.memory_space<vmem>>, vector<1x16x128xf32>
    %77 = vector.shape_cast %76 : vector<1x16x128xf32> to vector<16x128xf32>
    %c4 = arith.constant 4 : index
    %c0_31 = arith.constant 0 : index
    %c0_32 = arith.constant 0 : index
    %78 = vector.load %arg2[%c4, %c0_31, %c0_32] : memref<5x16x128xf32, #tpu.memory_space<vmem>>, vector<1x16x128xf32>
    %79 = vector.shape_cast %78 : vector<1x16x128xf32> to vector<16x128xf32>
    %cst_33 = arith.constant dense<0.000000e+00> : vector<16x128xf32>
    %80 = tpu.matmul %75, %48, %cst_33 {dimension_numbers = #tpu.dot_dimension_numbers<[1], [0], [0], [1], [0, 0, 1, 1], [], []>} : vector<16x128xf32>, vector<128x128xf32>, vector<16x128xf32> -> vector<16x128xf32>
    %81 = arith.mulf %75, %75 : vector<16x128xf32>
    %cst_34 = arith.constant dense<0.000000e+00> : vector<16x128xf32>
    %82 = tpu.matmul %81, %48, %cst_34 {dimension_numbers = #tpu.dot_dimension_numbers<[1], [0], [0], [1], [0, 0, 1, 1], [], []>} : vector<16x128xf32>, vector<128x128xf32>, vector<16x128xf32> -> vector<16x128xf32>
    %83 = arith.mulf %80, %80 : vector<16x128xf32>
    %84 = arith.subf %82, %83 : vector<16x128xf32>
    %85 = arith.subf %75, %80 : vector<16x128xf32>
    %cst_35 = arith.constant 9.99999974E-6 : f32
    %86 = vector.broadcast %cst_35 : f32 to vector<16x128xf32>
    %87 = arith.addf %84, %86 : vector<16x128xf32>
    %88 = math.rsqrt %87 : vector<16x128xf32>
    %89 = arith.mulf %85, %88 : vector<16x128xf32>
    %90 = arith.mulf %89, %77 : vector<16x128xf32>
    %91 = arith.addf %90, %79 : vector<16x128xf32>
    %c0_36 = arith.constant 0 : index
    %c0_37 = arith.constant 0 : index
    %92 = vector.load %arg3[%c0_36, %c0_37] : memref<16x128xf32, #tpu.memory_space<vmem>>, vector<16x128xf32>
    tpu.vector_store %arg3[%c0_36, %c0_37], %91 {strides = array<i32>} : memref<16x128xf32, #tpu.memory_space<vmem>>, vector<16x128xf32>,
    return
  }
}

</mosaic_0001>

<llo_original>
// kernel: transformer_encoder_layer.1
$region0: #{transformer_encoder_layer.1}
  #allocation0 [shape = 'u32[]', space=smem, size = 0x4, offset = 0x4, fixed_abs, tag = 'smem constant byte address 0x4 - core index']
  #allocation1 [shape = 'u32[144,128]{1,0:T(1,128)}', space=vmem, size = 0x12000, scoped, tag = 'internal scratch']
  %s0 = inlined_call_operand.vmem [shape: f32[16,128], index: 0, kind: input, shape index: {}]
  %s1 = inlined_call_operand.hbm [shape: f32[128,896], index: 1, kind: input, shape index: {}]
  %s2 = inlined_call_operand.hbm [shape: f32[5,16,128], index: 2, kind: input, shape index: {}]
  %s3 = inlined_call_operand.hbm [shape: f32[16,128], index: 3, kind: output, shape index: {}]
  %s4 = sld [smem:[#allocation0]]
  $region30: #{transformer_encoder_layer.1} parent=0
    _
  %s6 = ssub.s32 1, %s4
  %s7 = scalar_select 0, %s6, %s4
  $region1: #{transformer_encoder_layer.1} parent=0
    #allocation2 [shape = 'u8[458752]{0}', space=vmem, size = 0x70000, scoped, tag = 'input window, operand 1, single buffered']
    #allocation3 [shape = 's32[1]{0}', space=sflag, size = 0x4, scoped, tag = 'scoped memory for transformer_encoder_layer.1']
    #allocation4 [shape = 's32[1]{0}', space=sflag, size = 0x4, scoped, tag = 'scoped memory for transformer_encoder_layer.1']
    #allocation5 [shape = 'u8[40960]{0}', space=vmem, size = 0xa000, scoped, tag = 'input window, operand 2, single buffered']
    #allocation6 [shape = 's32[1]{0}', space=sflag, size = 0x4, scoped, tag = 'scoped memory for transformer_encoder_layer.1']
    #allocation7 [shape = 'u8[8192]{0}', space=vmem, size = 0x2000, scoped, tag = 'output window, operand 0, single buffered']
    %8 = vsyncpa [#allocation3], 0
    %9 = vsyncpa [#allocation6], 0
    %10 = vsyncpa [#allocation4], 0
    // Predicated region
    $region2: #{transformer_encoder_layer.1} parent=1 // pred_check
      _
    $region3: #{transformer_encoder_layer.1} parent=1 // pred_check_branch
      %12 = sbr.rel (0) target = $region5
    $region4: #{transformer_encoder_layer.1} parent=1 // pred_region
      _
    $region5: #{transformer_encoder_layer.1} parent=1 // pred_fallthru
      _
    // Predicated region
    $region6: #{transformer_encoder_layer.1} parent=1 // pred_check
      _
    $region7: #{transformer_encoder_layer.1} parent=1 // pred_check_branch
      %14 = sbr.rel (0) target = $region9
    $region8: #{transformer_encoder_layer.1} parent=1 // pred_region
      %s16 = ssub.s32 14336, 14336
      %17 = vsyncadd [#allocation3], %s16
      %s18 = sshll.u32 [#allocation2], 4
      %s19 = int_to_ptr.vmem [resolvable:$true] %s18
      %24 = dma.hbm_to_vmem [thread:$0]  %s1, 14336, %s19, [#allocation3], 896, 896, 56
    $region9: #{transformer_encoder_layer.1} parent=1 // pred_fallthru
      _
    // Predicated region
    $region10: #{transformer_encoder_layer.1} parent=1 // pred_check
      _
    $region11: #{transformer_encoder_layer.1} parent=1 // pred_check_branch
      %26 = sbr.rel (0) target = $region13
    $region12: #{transformer_encoder_layer.1} parent=1 // pred_region
      %s28 = ssub.s32 1280, 1280
      %29 = vsyncadd [#allocation6], %s28
      %s30 = sshll.u32 [#allocation5], 4
      %s31 = int_to_ptr.vmem [resolvable:$true] %s30
      %36 = dma.hbm_to_vmem [thread:$0]  %s2, 1280, %s31, [#allocation6], 128, 128, 8
    $region13: #{transformer_encoder_layer.1} parent=1 // pred_fallthru
      _
    // Predicated region
    $region14: #{transformer_encoder_layer.1} parent=1 // pred_check
      _
    $region15: #{transformer_encoder_layer.1} parent=1 // pred_check_branch
      %38 = sbr.rel (0) target = $region17
    $region16: #{transformer_encoder_layer.1} parent=1 // pred_region
      %39 = dma.done [#allocation3], 14336
    $region17: #{transformer_encoder_layer.1} parent=1 // pred_fallthru
      _
    // Predicated region
    $region18: #{transformer_encoder_layer.1} parent=1 // pred_check
      _
    $region19: #{transformer_encoder_layer.1} parent=1 // pred_check_branch
      %41 = sbr.rel (0) target = $region21
    $region20: #{transformer_encoder_layer.1} parent=1 // pred_region
      %42 = dma.done [#allocation6], 1280
    $region21: #{transformer_encoder_layer.1} parent=1 // pred_fallthru
      _
    %v43 = vld [vmem:[%s0] sm:$0xff]
    %v44 = vld [vmem:[%s0 + $0x8] sm:$0xff]
    %v45 = vlaneseq
    %v46 = vshrl.u32 %v45, 7
    %v47 = vadd.s32 %v46, 8
    %v48 = vadd.s32 %v46, 16
    %v49 = vadd.s32 %v46, 24
    %v50 = vadd.s32 %v46, 32
    %v51 = vadd.s32 %v46, 40
    %v52 = vadd.s32 %v46, 48
    %v53 = vadd.s32 %v46, 56
    %v54 = vlaneseq
    %v55 = vand.u32 %v54, 127
    %v56 = vshra.s32 %v55, 3
    %v57 = vshra.s32 %v46, 4
    %v58 = vshra.s32 %v47, 4
    %v59 = vshra.s32 %v48, 4
    %v60 = vshra.s32 %v49, 4
    %v61 = vshra.s32 %v50, 4
    %v62 = vshra.s32 %v51, 4
    %v63 = vshra.s32 %v52, 4
    %v64 = vshra.s32 %v53, 4
    %vm65 = vcmp.eq.s32.totalorder %v56, %v57
    %vm66 = vcmp.eq.s32.totalorder %v56, %v58
    %vm67 = vcmp.eq.s32.totalorder %v56, %v59
    %vm68 = vcmp.eq.s32.totalorder %v56, %v60
    %vm69 = vcmp.eq.s32.totalorder %v56, %v61
    %vm70 = vcmp.eq.s32.totalorder %v56, %v62
    %vm71 = vcmp.eq.s32.totalorder %v56, %v63
    %vm72 = vcmp.eq.s32.totalorder %v56, %v64
    %v73 = vsel %vm65, 1, 0
    %v74 = vsel %vm66, 1, 0
    %v75 = vsel %vm67, 1, 0
    %v76 = vsel %vm68, 1, 0
    %v77 = vsel %vm69, 1, 0
    %v78 = vsel %vm70, 1, 0
    %v79 = vsel %vm71, 1, 0
    %v80 = vsel %vm72, 1, 0
    %v81 = vcvt.s32.f32 %v73
    %v82 = vcvt.s32.f32 %v74
    %v83 = vcvt.s32.f32 %v75
    %v84 = vcvt.s32.f32 %v76
    %v85 = vcvt.s32.f32 %v77
    %v86 = vcvt.s32.f32 %v78
    %v87 = vcvt.s32.f32 %v79
    %v88 = vcvt.s32.f32 %v80
    %v89 = vshra.s32 %v55, 4
    %vm90 = vcmp.eq.s32.totalorder %v57, %v89
    %vm91 = vcmp.eq.s32.totalorder %v58, %v89
    %vm92 = vcmp.eq.s32.totalorder %v59, %v89
    %vm93 = vcmp.eq.s32.totalorder %v60, %v89
    %vm94 = vcmp.eq.s32.totalorder %v61, %v89
    %vm95 = vcmp.eq.s32.totalorder %v62, %v89
    %vm96 = vcmp.eq.s32.totalorder %v63, %v89
    %vm97 = vcmp.eq.s32.totalorder %v64, %v89
    %v98 = vsel %vm90, 1, 0
    %v99 = vsel %vm91, 1, 0
    %v100 = vsel %vm92, 1, 0
    %v101 = vsel %vm93, 1, 0
    %v102 = vsel %vm94, 1, 0
    %v103 = vsel %vm95, 1, 0
    %v104 = vsel %vm96, 1, 0
    %v105 = vsel %vm97, 1, 0
    %v106 = vcvt.s32.f32 %v98
    %v107 = vcvt.s32.f32 %v99
    %v108 = vcvt.s32.f32 %v100
    %v109 = vcvt.s32.f32 %v101
    %v110 = vcvt.s32.f32 %v102
    %v111 = vcvt.s32.f32 %v103
    %v112 = vcvt.s32.f32 %v104
    %v113 = vcvt.s32.f32 %v105
    %v114 = vand.u32 %v46, 1
    %v115 = vand.u32 %v47, 1
    %v116 = vand.u32 %v55, 1
    %vm117 = vcmp.eq.s32.totalorder %v114, %v116
    %vm118 = vcmp.eq.s32.totalorder %v115, %v116
    %v119 = vld [vmem:[#allocation2] sm:$0xff]
    %v120 = vld [vmem:[#allocation2 + $0x8] sm:$0xff]
    %v121 = vld [vmem:[#allocation2 + $0x10] sm:$0xff]
    %v122 = vld [vmem:[#allocation2 + $0x38] sm:$0xff]
    %v123 = vld [vmem:[#allocation2 + $0x40] sm:$0xff]
    %v124 = vld [vmem:[#allocation2 + $0x48] sm:$0xff]
    %v125 = vld [vmem:[#allocation2 + $0x70] sm:$0xff]
    %v126 = vld [vmem:[#allocation2 + $0x78] sm:$0xff]
    %v127 = vld [vmem:[#allocation2 + $0x80] sm:$0xff]
    %v128 = vld [vmem:[#allocation2 + $0xa8] sm:$0xff]
    %v129 = vld [vmem:[#allocation2 + $0xb0] sm:$0xff]
    %v130 = vld [vmem:[#allocation2 + $0xb8] sm:$0xff]
    %v131 = vld [vmem:[#allocation2 + $0xe0] sm:$0xff]
    %v132 = vld [vmem:[#allocation2 + $0xe8] sm:$0xff]
    %v133 = vld [vmem:[#allocation2 + $0xf0] sm:$0xff]
    %v134 = vld [vmem:[#allocation2 + $0x118] sm:$0xff]
    %v135 = vld [vmem:[#allocation2 + $0x120] sm:$0xff]
    %v136 = vld [vmem:[#allocation2 + $0x128] sm:$0xff]
    %v137 = vld [vmem:[#allocation2 + $0x150] sm:$0xff]
    %v138 = vld [vmem:[#allocation2 + $0x158] sm:$0xff]
    %v139 = vld [vmem:[#allocation2 + $0x160] sm:$0xff]
    %v140 = vld [vmem:[#allocation2 + $0x188] sm:$0xff]
    %v141 = vld [vmem:[#allocation2 + $0x190] sm:$0xff]
    %v142 = vld [vmem:[#allocation2 + $0x198] sm:$0xff]
    %v143 = vld [vmem:[#allocation2 + $0x1c0] sm:$0xff]
    %v144 = vld [vmem:[#allocation2 + $0x1c8] sm:$0xff]
    %v145 = vld [vmem:[#allocation2 + $0x1d0] sm:$0xff]
    %v146 = vld [vmem:[#allocation2 + $0x1f8] sm:$0xff]
    %v147 = vld [vmem:[#allocation2 + $0x200] sm:$0xff]
    %v148 = vld [vmem:[#allocation2 + $0x208] sm:$0xff]
    %v149 = vld [vmem:[#allocation2 + $0x230] sm:$0xff]
    %v150 = vld [vmem:[#allocation2 + $0x238] sm:$0xff]
    %v151 = vld [vmem:[#allocation2 + $0x240] sm:$0xff]
    %v152 = vld [vmem:[#allocation2 + $0x268] sm:$0xff]
    %v153 = vld [vmem:[#allocation2 + $0x270] sm:$0xff]
    %v154 = vld [vmem:[#allocation2 + $0x278] sm:$0xff]
    %v155 = vld [vmem:[#allocation2 + $0x2a0] sm:$0xff]
    %v156 = vld [vmem:[#allocation2 + $0x2a8] sm:$0xff]
    %v157 = vld [vmem:[#allocation2 + $0x2b0] sm:$0xff]
    %v158 = vld [vmem:[#allocation2 + $0x2d8] sm:$0xff]
    %v159 = vld [vmem:[#allocation2 + $0x2e0] sm:$0xff]
    %v160 = vld [vmem:[#allocation2 + $0x2e8] sm:$0xff]
    %v161 = vld [vmem:[#allocation2 + $0x310] sm:$0xff]
    %v162 = vld [vmem:[#allocation2 + $0x318] sm:$0xff]
    %v163 = vld [vmem:[#allocation2 + $0x320] sm:$0xff]
    %v164 = vld [vmem:[#allocation2 + $0x348] sm:$0xff]
    %v165 = vld [vmem:[#allocation2 + $0x350] sm:$0xff]
    %v166 = vld [vmem:[#allocation2 + $0x358] sm:$0xff]
    %167 = vmatprep.subr.mxu0 %v120
    %168 = vmatpush1.msra.mxu0 %v119
    %169 = vmatprep.subr.mxu0 %v123
    %170 = vmatpush1.msra.mxu0 %v122
    %171 = vmatprep.subr.mxu0 %v126
    %172 = vmatpush1.msra.mxu0 %v125
    %173 = vmatprep.subr.mxu0 %v129
    %174 = vmatpush1.msra.mxu0 %v128
    %175 = vmatprep.subr.mxu0 %v132
    %176 = vmatpush1.msra.mxu0 %v131
    %177 = vmatprep.subr.mxu0 %v135
    %178 = vmatpush1.msra.mxu0 %v134
    %179 = vmatprep.subr.mxu0 %v138
    %180 = vmatpush1.msra.mxu0 %v137
    %181 = vmatprep.subr.mxu0 %v141
    %182 = vmatpush1.msra.mxu0 %v140
    %183 = vmatprep.subr.mxu0 %v144
    %184 = vmatpush1.msra.mxu0 %v143
    %185 = vmatprep.subr.mxu0 %v147
    %186 = vmatpush1.msra.mxu0 %v146
    %187 = vmatprep.subr.mxu0 %v150
    %188 = vmatpush1.msra.mxu0 %v149
    %189 = vmatprep.subr.mxu0 %v153
    %190 = vmatpush1.msra.mxu0 %v152
    %191 = vmatprep.subr.mxu0 %v156
    %192 = vmatpush1.msra.mxu0 %v155
    %193 = vmatprep.subr.mxu0 %v159
    %194 = vmatpush1.msra.mxu0 %v158
    %195 = vmatprep.subr.mxu0 %v162
    %196 = vmatpush1.msra.mxu0 %v161
    %197 = vmatprep.subr.mxu0 %v165
    %198 = vmatpush1.msra.mxu0 %v164
    %199 = vmatprep.subr.mxu0 0.0
    %200 = vmatpush1.msra.mxu0 0.0
    %201 = vmatprep.subr.mxu0 0.0
    %202 = vmatpush1.msra.mxu0 0.0
    %203 = vmatprep.subr.mxu0 0.0
    %204 = vmatpush1.msra.mxu0 0.0
    %205 = vmatprep.subr.mxu0 0.0
    %206 = vmatpush1.msra.mxu0 0.0
    %207 = vmatprep.subr.mxu0 0.0
    %208 = vmatpush1.msra.mxu0 0.0
    %209 = vmatprep.subr.mxu0 0.0
    %210 = vmatpush1.msra.mxu0 0.0
    %211 = vmatprep.subr.mxu0 0.0
    %212 = vmatpush1.msra.mxu0 0.0
    %213 = vmatprep.subr.mxu0 0.0
    %214 = vmatpush1.msra.mxu0 0.0
    %215 = vmatprep.subr.mxu0 0.0
    %216 = vmatpush1.msra.mxu0 0.0
    %217 = vmatprep.subr.mxu0 0.0
    %218 = vmatpush1.msra.mxu0 0.0
    %219 = vmatprep.subr.mxu0 0.0
    %220 = vmatpush1.msra.mxu0 0.0
    %221 = vmatprep.subr.mxu0 0.0
    %222 = vmatpush1.msra.mxu0 0.0
    %223 = vmatprep.subr.mxu0 0.0
    %224 = vmatpush1.msra.mxu0 0.0
    %225 = vmatprep.subr.mxu0 0.0
    %226 = vmatpush1.msra.mxu0 0.0
    %227 = vmatprep.subr.mxu0 0.0
    %228 = vmatpush1.msra.mxu0 0.0
    %229 = vmatprep.subr.mxu0 0.0
    %230 = vmatpush1.msra.mxu0 0.0
    %231 = vmatprep.mubr.f32.mxu0 0.0
    %232 = vmatmul.mubr.f32.gmra.mrb[0].mxu0 %v43
    %v233 = vpop.f32.mrb[0].mxu0
    %v234 = vadd.f32 0.0, %v233
    %v235 = vpop.f32.mrb[0].mxu0
    %v236 = vadd.f32 0.0, %v235
    %237 = vmatprep.mubr.f32.mxu0 0.0
    %238 = vmatmul.mubr.f32.gmra.mrb[0].mxu0 %v44
    %v239 = vpop.f32.mrb[0].mxu0
    %v240 = vadd.f32 0.0, %v239
    %v241 = vpop.f32.mrb[0].mxu0
    %v242 = vadd.f32 0.0, %v241
    %243 = vdwg.mxu0
    %244 = vmatprep.subr.mxu0 0.0
    %245 = vmatpush1.msra.mxu0 %v121
    %246 = vmatprep.subr.mxu0 0.0
    %247 = vmatpush1.msra.mxu0 %v124
    %248 = vmatprep.subr.mxu0 0.0
    %249 = vmatpush1.msra.mxu0 %v127
    %250 = vmatprep.subr.mxu0 0.0
    %251 = vmatpush1.msra.mxu0 %v130
    %252 = vmatprep.subr.mxu0 0.0
    %253 = vmatpush1.msra.mxu0 %v133
    %254 = vmatprep.subr.mxu0 0.0
    %255 = vmatpush1.msra.mxu0 %v136
    %256 = vmatprep.subr.mxu0 0.0
    %257 = vmatpush1.msra.mxu0 %v139
    %258 = vmatprep.subr.mxu0 0.0
    %259 = vmatpush1.msra.mxu0 %v142
    %260 = vmatprep.subr.mxu0 0.0
    %261 = vmatpush1.msra.mxu0 %v145
    %262 = vmatprep.subr.mxu0 0.0
    %263 = vmatpush1.msra.mxu0 %v148
    %264 = vmatprep.subr.mxu0 0.0
    %265 = vmatpush1.msra.mxu0 %v151
    %266 = vmatprep.subr.mxu0 0.0
    %267 = vmatpush1.msra.mxu0 %v154
    %268 = vmatprep.subr.mxu0 0.0
    %269 = vmatpush1.msra.mxu0 %v157
    %270 = vmatprep.subr.mxu0 0.0
    %271 = vmatpush1.msra.mxu0 %v160
    %272 = vmatprep.subr.mxu0 0.0
    %273 = vmatpush1.msra.mxu0 %v163
    %274 = vmatprep.subr.mxu0 0.0
    %275 = vmatpush1.msra.mxu0 %v166
    %276 = vmatprep.subr.mxu0 0.0
    %277 = vmatpush1.msra.mxu0 0.0
    %278 = vmatprep.subr.mxu0 0.0
    %279 = vmatpush1.msra.mxu0 0.0
    %280 = vmatprep.subr.mxu0 0.0
    %281 = vmatpush1.msra.mxu0 0.0
    %282 = vmatprep.subr.mxu0 0.0
    %283 = vmatpush1.msra.mxu0 0.0
    %284 = vmatprep.subr.mxu0 0.0
    %285 = vmatpush1.msra.mxu0 0.0
    %286 = vmatprep.subr.mxu0 0.0
    %287 = vmatpush1.msra.mxu0 0.0
    %288 = vmatprep.subr.mxu0 0.0
    %289 = vmatpush1.msra.mxu0 0.0
    %290 = vmatprep.subr.mxu0 0.0
    %291 = vmatpush1.msra.mxu0 0.0
    %292 = vmatprep.subr.mxu0 0.0
    %293 = vmatpush1.msra.mxu0 0.0
    %294 = vmatprep.subr.mxu0 0.0
    %295 = vmatpush1.msra.mxu0 0.0
    %296 = vmatprep.subr.mxu0 0.0
    %297 = vmatpush1.msra.mxu0 0.0
    %298 = vmatprep.subr.mxu0 0.0
    %299 = vmatpush1.msra.mxu0 0.0
    %300 = vmatprep.subr.mxu0 0.0
    %301 = vmatpush1.msra.mxu0 0.0
    %302 = vmatprep.subr.mxu0 0.0
    %303 = vmatpush1.msra.mxu0 0.0
    %304 = vmatprep.subr.mxu0 0.0
    %305 = vmatpush1.msra.mxu0 0.0
    %306 = vmatprep.subr.mxu0 0.0
    %307 = vmatpush1.msra.mxu0 0.0
    %308 = vmatprep.mubr.f32.mxu0 0.0
    %309 = vmatmul.mubr.f32.gmra.mrb[0].mxu0 %v43
    %v310 = vpop.f32.mrb[0].mxu0
    %v311 = vadd.f32 0.0, %v310
    %v312 = vpop.f32.mrb[0].mxu0
    %313 = vmatprep.mubr.f32.mxu0 0.0
    %314 = vmatmul.mubr.f32.gmra.mrb[0].mxu0 %v44
    %v315 = vpop.f32.mrb[0].mxu0
    %v316 = vadd.f32 0.0, %v315
    %v317 = vpop.f32.mrb[0].mxu0
    %318 = vdwg.mxu0
    %v319 = vmul.f32 %v236, %v81
    %v320 = vmul.f32 %v242, %v82
    %v321 = vmul.f32 %v236, %v83
    %v322 = vmul.f32 %v242, %v84
    %v323 = vmul.f32 %v236, %v85
    %v324 = vmul.f32 %v242, %v86
    %v325 = vmul.f32 %v236, %v87
    %v326 = vmul.f32 %v242, %v88
    %v327 = vmul.f32 %v311, %v81
    %v328 = vmul.f32 %v316, %v82
    %v329 = vmul.f32 %v311, %v83
    %v330 = vmul.f32 %v316, %v84
    %v331 = vmul.f32 %v311, %v85
    %v332 = vmul.f32 %v316, %v86
    %v333 = vmul.f32 %v311, %v87
    %v334 = vmul.f32 %v316, %v88
    %335 = vmatprep.subr.mxu0 0.0
    %336 = vmatpush1.xpose.msra.mxu0 %v319
    %337 = vmatprep.subr.mxu0 0.0
    %338 = vmatpush1.xpose.msra.mxu0 %v320
    %339 = vmatprep.subr.mxu0 0.0
    %340 = vmatpush1.xpose.msra.mxu0 %v321
    %341 = vmatprep.subr.mxu0 0.0
    %342 = vmatpush1.xpose.msra.mxu0 %v322
    %343 = vmatprep.subr.mxu0 0.0
    %344 = vmatpush1.xpose.msra.mxu0 %v323
    %345 = vmatprep.subr.mxu0 0.0
    %346 = vmatpush1.xpose.msra.mxu0 %v324
    %347 = vmatprep.subr.mxu0 0.0
    %348 = vmatpush1.xpose.msra.mxu0 %v325
    %349 = vmatprep.subr.mxu0 0.0
    %350 = vmatpush1.xpose.msra.mxu0 %v326
    %351 = vmatprep.subr.mxu0 0.0
    %352 = vmatpush1.xpose.msra.mxu0 0.0
    %353 = vmatprep.subr.mxu0 0.0
    %354 = vmatpush1.xpose.msra.mxu0 0.0
    %355 = vmatprep.subr.mxu0 0.0
    %356 = vmatpush1.xpose.msra.mxu0 0.0
    %357 = vmatprep.subr.mxu0 0.0
    %358 = vmatpush1.xpose.msra.mxu0 0.0
    %359 = vmatprep.subr.mxu0 0.0
    %360 = vmatpush1.xpose.msra.mxu0 0.0
    %361 = vmatprep.subr.mxu0 0.0
    %362 = vmatpush1.xpose.msra.mxu0 0.0
    %363 = vmatprep.subr.mxu0 0.0
    %364 = vmatpush1.xpose.msra.mxu0 0.0
    %365 = vmatprep.subr.mxu0 0.0
    %366 = vmatpush1.xpose.msra.mxu0 0.0
    %367 = vmatprep.subr.mxu0 0.0
    %368 = vmatpush1.xpose.msra.mxu0 0.0
    %369 = vmatprep.subr.mxu0 0.0
    %370 = vmatpush1.xpose.msra.mxu0 0.0
    %371 = vmatprep.subr.mxu0 0.0
    %372 = vmatpush1.xpose.msra.mxu0 0.0
    %373 = vmatprep.subr.mxu0 0.0
    %374 = vmatpush1.xpose.msra.mxu0 0.0
    %375 = vmatprep.subr.mxu0 0.0
    %376 = vmatpush1.xpose.msra.mxu0 0.0
    %377 = vmatprep.subr.mxu0 0.0
    %378 = vmatpush1.xpose.msra.mxu0 0.0
    %379 = vmatprep.subr.mxu0 0.0
    %380 = vmatpush1.xpose.msra.mxu0 0.0
    %381 = vmatprep.subr.mxu0 0.0
    %382 = vmatpush1.xpose.msra.mxu0 0.0
    %383 = vmatprep.subr.mxu0 0.0
    %384 = vmatpush1.xpose.msra.mxu0 0.0
    %385 = vmatprep.subr.mxu0 0.0
    %386 = vmatpush1.xpose.msra.mxu0 0.0
    %387 = vmatprep.subr.mxu0 0.0
    %388 = vmatpush1.xpose.msra.mxu0 0.0
    %389 = vmatprep.subr.mxu0 0.0
    %390 = vmatpush1.xpose.msra.mxu0 0.0
    %391 = vmatprep.subr.mxu0 0.0
    %392 = vmatpush1.xpose.msra.mxu0 0.0
    %393 = vmatprep.subr.mxu0 0.0
    %394 = vmatpush1.xpose.msra.mxu0 0.0
    %395 = vmatprep.subr.mxu0 0.0
    %396 = vmatpush1.xpose.msra.mxu0 0.0
    %397 = vmatprep.subr.mxu0 0.0
    %398 = vmatpush1.xpose.msra.mxu0 0.0
    %399 = vmatprep.mubr.f32.mxu0 0.0
    %400 = vmatmul.mubr.f32.gmra.mrb[0].mxu0 %v234
    %v401 = vpop.f32.mrb[0].mxu0
    %v402 = vadd.f32 0.0, %v401
    %v403 = vpop.f32.mrb[0].mxu0
    %404 = vmatprep.mubr.f32.mxu0 0.0
    %405 = vmatmul.mubr.f32.gmra.mrb[0].mxu0 %v240
    %v406 = vpop.f32.mrb[0].mxu0
    %v407 = vadd.f32 0.0, %v406
    %v408 = vpop.f32.mrb[0].mxu0
    %409 = vdwg.mxu0
    %v410 = vsel %vm117, %v402, -1e+30
    %v411 = vsel %vm118, %v407, -1e+30
    %vm412 = vcmask 523264
    %v413 = vsel %vm412, %v410, -inf
    %414 = vmax.xlane.f32.xlu0 %v413
    %v415 = vpop.xlane.xlu0 %414
    %v416 = vsel %vm412, %v411, -inf
    %417 = vmax.xlane.f32.xlu0 %v416
    %v418 = vpop.xlane.xlu0 %417
    %v419 = vsub.f32 %v410, %v415
    %v420 = vsub.f32 %v411, %v418
    %v421 = vmul.f32 %v419, 1.442695
    %v422 = vpow.pop %v421
    %v423 = vmul.f32 %v420, 1.442695
    %v424 = vpow.pop %v423
    %v426 = vsel %vm412, %v422, 0
    %v429 = vsel %vm412, %v424, 0
    %431 = vmatprep.subr.mxu0 0.0
    %432 = vmatpush1.msra.mxu0 %v106
    %433 = vmatprep.subr.mxu0 0.0
    %434 = vmatpush1.msra.mxu0 %v107
    %435 = vmatprep.subr.mxu0 0.0
    %436 = vmatpush1.msra.mxu0 %v108
    %437 = vmatprep.subr.mxu0 0.0
    %438 = vmatpush1.msra.mxu0 %v109
    %439 = vmatprep.subr.mxu0 0.0
    %440 = vmatpush1.msra.mxu0 %v110
    %441 = vmatprep.subr.mxu0 0.0
    %442 = vmatpush1.msra.mxu0 %v111
    %443 = vmatprep.subr.mxu0 0.0
    %444 = vmatpush1.msra.mxu0 %v112
    %445 = vmatprep.subr.mxu0 0.0
    %446 = vmatpush1.msra.mxu0 %v113
    %447 = vmatprep.subr.mxu0 0.0
    %448 = vmatpush1.msra.mxu0 0.0
    %449 = vmatprep.subr.mxu0 0.0
    %450 = vmatpush1.msra.mxu0 0.0
    %451 = vmatprep.subr.mxu0 0.0
    %452 = vmatpush1.msra.mxu0 0.0
    %453 = vmatprep.subr.mxu0 0.0
    %454 = vmatpush1.msra.mxu0 0.0
    %455 = vmatprep.subr.mxu0 0.0
    %456 = vmatpush1.msra.mxu0 0.0
    %457 = vmatprep.subr.mxu0 0.0
    %458 = vmatpush1.msra.mxu0 0.0
    %459 = vmatprep.subr.mxu0 0.0
    %460 = vmatpush1.msra.mxu0 0.0
    %461 = vmatprep.subr.mxu0 0.0
    %462 = vmatpush1.msra.mxu0 0.0
    %463 = vmatprep.subr.mxu0 0.0
    %464 = vmatpush1.msra.mxu0 0.0
    %465 = vmatprep.subr.mxu0 0.0
    %466 = vmatpush1.msra.mxu0 0.0
    %467 = vmatprep.subr.mxu0 0.0
    %468 = vmatpush1.msra.mxu0 0.0
    %469 = vmatprep.subr.mxu0 0.0
    %470 = vmatpush1.msra.mxu0 0.0
    %471 = vmatprep.subr.mxu0 0.0
    %472 = vmatpush1.msra.mxu0 0.0
    %473 = vmatprep.subr.mxu0 0.0
    %474 = vmatpush1.msra.mxu0 0.0
    %475 = vmatprep.subr.mxu0 0.0
    %476 = vmatpush1.msra.mxu0 0.0
    %477 = vmatprep.subr.mxu0 0.0
    %478 = vmatpush1.msra.mxu0 0.0
    %479 = vmatprep.subr.mxu0 0.0
    %480 = vmatpush1.msra.mxu0 0.0
    %481 = vmatprep.subr.mxu0 0.0
    %482 = vmatpush1.msra.mxu0 0.0
    %483 = vmatprep.subr.mxu0 0.0
    %484 = vmatpush1.msra.mxu0 0.0
    %485 = vmatprep.subr.mxu0 0.0
    %486 = vmatpush1.msra.mxu0 0.0
    %487 = vmatprep.subr.mxu0 0.0
    %488 = vmatpush1.msra.mxu0 0.0
    %489 = vmatprep.subr.mxu0 0.0
    %490 = vmatpush1.msra.mxu0 0.0
    %491 = vmatprep.subr.mxu0 0.0
    %492 = vmatpush1.msra.mxu0 0.0
    %493 = vmatprep.subr.mxu0 0.0
    %494 = vmatpush1.msra.mxu0 0.0
    %495 = vmatprep.mubr.f32.mxu0 0.0
    %496 = vmatmul.mubr.f32.gmra.mrb[0].mxu0 %v426
    %v497 = vpop.f32.mrb[0].mxu0
    %v498 = vadd.f32 0.0, %v497
    %v499 = vpop.f32.mrb[0].mxu0
    %500 = vmatprep.mubr.f32.mxu0 0.0
    %501 = vmatmul.mubr.f32.gmra.mrb[0].mxu0 %v429
    %v502 = vpop.f32.mrb[0].mxu0
    %v503 = vadd.f32 0.0, %v502
    %v504 = vpop.f32.mrb[0].mxu0
    %505 = vdwg.mxu0
    %v506 = vrcp.pop %v498
    %v507 = vmul.f32 %v422, %v506
    %v508 = vrcp.pop %v503
    %v509 = vmul.f32 %v424, %v508
    %v511 = vsel %vm412, %v507, 0
    %v514 = vsel %vm412, %v509, 0
    %516 = vmatprep.subr.mxu0 0.0
    %517 = vmatpush1.msra.mxu0 %v327
    %518 = vmatprep.subr.mxu0 0.0
    %519 = vmatpush1.msra.mxu0 %v328
    %520 = vmatprep.subr.mxu0 0.0
    %521 = vmatpush1.msra.mxu0 %v329
    %522 = vmatprep.subr.mxu0 0.0
    %523 = vmatpush1.msra.mxu0 %v330
    %524 = vmatprep.subr.mxu0 0.0
    %525 = vmatpush1.msra.mxu0 %v331
    %526 = vmatprep.subr.mxu0 0.0
    %527 = vmatpush1.msra.mxu0 %v332
    %528 = vmatprep.subr.mxu0 0.0
    %529 = vmatpush1.msra.mxu0 %v333
    %530 = vmatprep.subr.mxu0 0.0
    %531 = vmatpush1.msra.mxu0 %v334
    %532 = vmatprep.subr.mxu0 0.0
    %533 = vmatpush1.msra.mxu0 0.0
    %534 = vmatprep.subr.mxu0 0.0
    %535 = vmatpush1.msra.mxu0 0.0
    %536 = vmatprep.subr.mxu0 0.0
    %537 = vmatpush1.msra.mxu0 0.0
    %538 = vmatprep.subr.mxu0 0.0
    %539 = vmatpush1.msra.mxu0 0.0
    %540 = vmatprep.subr.mxu0 0.0
    %541 = vmatpush1.msra.mxu0 0.0
    %542 = vmatprep.subr.mxu0 0.0
    %543 = vmatpush1.msra.mxu0 0.0
    %544 = vmatprep.subr.mxu0 0.0
    %545 = vmatpush1.msra.mxu0 0.0
    %546 = vmatprep.subr.mxu0 0.0
    %547 = vmatpush1.msra.mxu0 0.0
    %548 = vmatprep.subr.mxu0 0.0
    %549 = vmatpush1.msra.mxu0 0.0
    %550 = vmatprep.subr.mxu0 0.0
    %551 = vmatpush1.msra.mxu0 0.0
    %552 = vmatprep.subr.mxu0 0.0
    %553 = vmatpush1.msra.mxu0 0.0
    %554 = vmatprep.subr.mxu0 0.0
    %555 = vmatpush1.msra.mxu0 0.0
    %556 = vmatprep.subr.mxu0 0.0
    %557 = vmatpush1.msra.mxu0 0.0
    %558 = vmatprep.subr.mxu0 0.0
    %559 = vmatpush1.msra.mxu0 0.0
    %560 = vmatprep.subr.mxu0 0.0
    %561 = vmatpush1.msra.mxu0 0.0
    %562 = vmatprep.subr.mxu0 0.0
    %563 = vmatpush1.msra.mxu0 0.0
    %564 = vmatprep.subr.mxu0 0.0
    %565 = vmatpush1.msra.mxu0 0.0
    %566 = vmatprep.subr.mxu0 0.0
    %567 = vmatpush1.msra.mxu0 0.0
    %568 = vmatprep.subr.mxu0 0.0
    %569 = vmatpush1.msra.mxu0 0.0
    %570 = vmatprep.subr.mxu0 0.0
    %571 = vmatpush1.msra.mxu0 0.0
    %572 = vmatprep.subr.mxu0 0.0
    %573 = vmatpush1.msra.mxu0 0.0
    %574 = vmatprep.subr.mxu0 0.0
    %575 = vmatpush1.msra.mxu0 0.0
    %576 = vmatprep.subr.mxu0 0.0
    %577 = vmatpush1.msra.mxu0 0.0
    %578 = vmatprep.subr.mxu0 0.0
    %579 = vmatpush1.msra.mxu0 0.0
    %580 = vmatprep.mubr.f32.mxu0 0.0
    %581 = vmatmul.mubr.f32.gmra.mrb[0].mxu0 %v511
    %v582 = vpop.f32.mrb[0].mxu0
    %v583 = vadd.f32 0.0, %v582
    %v584 = vpop.f32.mrb[0].mxu0
    %585 = vmatprep.mubr.f32.mxu0 0.0
    %586 = vmatmul.mubr.f32.gmra.mrb[0].mxu0 %v514
    %v587 = vpop.f32.mrb[0].mxu0
    %v588 = vadd.f32 0.0, %v587
    %v589 = vpop.f32.mrb[0].mxu0
    %590 = vdwg.mxu0
    %v591 = vld [vmem:[#allocation2 + $0x18] sm:$0xff]
    %v592 = vld [vmem:[#allocation2 + $0x50] sm:$0xff]
    %v593 = vld [vmem:[#allocation2 + $0x88] sm:$0xff]
    %v594 = vld [vmem:[#allocation2 + $0xc0] sm:$0xff]
    %v595 = vld [vmem:[#allocation2 + $0xf8] sm:$0xff]
    %v596 = vld [vmem:[#allocation2 + $0x130] sm:$0xff]
    %v597 = vld [vmem:[#allocation2 + $0x168] sm:$0xff]
    %v598 = vld [vmem:[#allocation2 + $0x1a0] sm:$0xff]
    %v599 = vld [vmem:[#allocation2 + $0x1d8] sm:$0xff]
    %v600 = vld [vmem:[#allocation2 + $0x210] sm:$0xff]
    %v601 = vld [vmem:[#allocation2 + $0x248] sm:$0xff]
    %v602 = vld [vmem:[#allocation2 + $0x280] sm:$0xff]
    %v603 = vld [vmem:[#allocation2 + $0x2b8] sm:$0xff]
    %v604 = vld [vmem:[#allocation2 + $0x2f0] sm:$0xff]
    %v605 = vld [vmem:[#allocation2 + $0x328] sm:$0xff]
    %v606 = vld [vmem:[#allocation2 + $0x360] sm:$0xff]
    %607 = vmatprep.subr.mxu0 0.0
    %608 = vmatpush1.msra.mxu0 %v591
    %609 = vmatprep.subr.mxu0 0.0
    %610 = vmatpush1.msra.mxu0 %v592
    %611 = vmatprep.subr.mxu0 0.0
    %612 = vmatpush1.msra.mxu0 %v593
    %613 = vmatprep.subr.mxu0 0.0
    %614 = vmatpush1.msra.mxu0 %v594
    %615 = vmatprep.subr.mxu0 0.0
    %616 = vmatpush1.msra.mxu0 %v595
    %617 = vmatprep.subr.mxu0 0.0
    %618 = vmatpush1.msra.mxu0 %v596
    %619 = vmatprep.subr.mxu0 0.0
    %620 = vmatpush1.msra.mxu0 %v597
    %621 = vmatprep.subr.mxu0 0.0
    %622 = vmatpush1.msra.mxu0 %v598
    %623 = vmatprep.subr.mxu0 0.0
    %624 = vmatpush1.msra.mxu0 %v599
    %625 = vmatprep.subr.mxu0 0.0
    %626 = vmatpush1.msra.mxu0 %v600
    %627 = vmatprep.subr.mxu0 0.0
    %628 = vmatpush1.msra.mxu0 %v601
    %629 = vmatprep.subr.mxu0 0.0
    %630 = vmatpush1.msra.mxu0 %v602
    %631 = vmatprep.subr.mxu0 0.0
    %632 = vmatpush1.msra.mxu0 %v603
    %633 = vmatprep.subr.mxu0 0.0
    %634 = vmatpush1.msra.mxu0 %v604
    %635 = vmatprep.subr.mxu0 0.0
    %636 = vmatpush1.msra.mxu0 %v605
    %637 = vmatprep.subr.mxu0 0.0
    %638 = vmatpush1.msra.mxu0 %v606
    %639 = vmatprep.subr.mxu0 0.0
    %640 = vmatpush1.msra.mxu0 0.0
    %641 = vmatprep.subr.mxu0 0.0
    %642 = vmatpush1.msra.mxu0 0.0
    %643 = vmatprep.subr.mxu0 0.0
    %644 = vmatpush1.msra.mxu0 0.0
    %645 = vmatprep.subr.mxu0 0.0
    %646 = vmatpush1.msra.mxu0 0.0
    %647 = vmatprep.subr.mxu0 0.0
    %648 = vmatpush1.msra.mxu0 0.0
    %649 = vmatprep.subr.mxu0 0.0
    %650 = vmatpush1.msra.mxu0 0.0
    %651 = vmatprep.subr.mxu0 0.0
    %652 = vmatpush1.msra.mxu0 0.0
    %653 = vmatprep.subr.mxu0 0.0
    %654 = vmatpush1.msra.mxu0 0.0
    %655 = vmatprep.subr.mxu0 0.0
    %656 = vmatpush1.msra.mxu0 0.0
    %657 = vmatprep.subr.mxu0 0.0
    %658 = vmatpush1.msra.mxu0 0.0
    %659 = vmatprep.subr.mxu0 0.0
    %660 = vmatpush1.msra.mxu0 0.0
    %661 = vmatprep.subr.mxu0 0.0
    %662 = vmatpush1.msra.mxu0 0.0
    %663 = vmatprep.subr.mxu0 0.0
    %664 = vmatpush1.msra.mxu0 0.0
    %665 = vmatprep.subr.mxu0 0.0
    %666 = vmatpush1.msra.mxu0 0.0
    %667 = vmatprep.subr.mxu0 0.0
    %668 = vmatpush1.msra.mxu0 0.0
    %669 = vmatprep.subr.mxu0 0.0
    %670 = vmatpush1.msra.mxu0 0.0
    %671 = vmatprep.mubr.f32.mxu0 0.0
    %672 = vmatmul.mubr.f32.gmra.mrb[0].mxu0 %v583
    %v673 = vpop.f32.mrb[0].mxu0
    %v674 = vadd.f32 0.0, %v673
    %v675 = vpop.f32.mrb[0].mxu0
    %676 = vmatprep.mubr.f32.mxu0 0.0
    %677 = vmatmul.mubr.f32.gmra.mrb[0].mxu0 %v588
    %v678 = vpop.f32.mrb[0].mxu0
    %v679 = vadd.f32 0.0, %v678
    %v680 = vpop.f32.mrb[0].mxu0
    %681 = vdwg.mxu0
    %v682 = vld [vmem:[#allocation2 + $0x30] sm:$0xff]
    %v683 = vld [vmem:[#allocation2 + $0x68] sm:$0xff]
    %v684 = vld [vmem:[#allocation2 + $0xa0] sm:$0xff]
    %v685 = vld [vmem:[#allocation2 + $0xd8] sm:$0xff]
    %v686 = vld [vmem:[#allocation2 + $0x110] sm:$0xff]
    %v687 = vld [vmem:[#allocation2 + $0x148] sm:$0xff]
    %v688 = vld [vmem:[#allocation2 + $0x180] sm:$0xff]
    %v689 = vld [vmem:[#allocation2 + $0x1b8] sm:$0xff]
    %v690 = vld [vmem:[#allocation2 + $0x1f0] sm:$0xff]
    %v691 = vld [vmem:[#allocation2 + $0x228] sm:$0xff]
    %v692 = vld [vmem:[#allocation2 + $0x260] sm:$0xff]
    %v693 = vld [vmem:[#allocation2 + $0x298] sm:$0xff]
    %v694 = vld [vmem:[#allocation2 + $0x2d0] sm:$0xff]
    %v695 = vld [vmem:[#allocation2 + $0x308] sm:$0xff]
    %v696 = vld [vmem:[#allocation2 + $0x340] sm:$0xff]
    %v697 = vld [vmem:[#allocation2 + $0x378] sm:$0xff]
    %v698 = vadd.f32 %v43, %v674
    %v699 = vadd.f32 %v44, %v679
    %v700 = vld [vmem:[#allocation5] sm:$0xff]
    %v701 = vld [vmem:[#allocation5 + $0x8] sm:$0xff]
    %v702 = vadd.f32 %v698, %v700
    %v703 = vadd.f32 %v699, %v701
    %s704 = scalar_lea.vmem [#allocation5], 16
    %v705 = vld [vmem:[%s704] sm:$0xff]
    %v706 = vld [vmem:[%s704 + $0x8] sm:$0xff]
    %s707 = scalar_lea.vmem [#allocation5], 32
    %v708 = vld [vmem:[%s707] sm:$0xff]
    %v709 = vld [vmem:[%s707 + $0x8] sm:$0xff]
    %710 = vmatprep.subr.mxu0 0.0
    %711 = vmatpush1.msra.mxu0 %v682
    %712 = vmatprep.subr.mxu0 0.0
    %713 = vmatpush1.msra.mxu0 %v683
    %714 = vmatprep.subr.mxu0 0.0
    %715 = vmatpush1.msra.mxu0 %v684
    %716 = vmatprep.subr.mxu0 0.0
    %717 = vmatpush1.msra.mxu0 %v685
    %718 = vmatprep.subr.mxu0 0.0
    %719 = vmatpush1.msra.mxu0 %v686
    %720 = vmatprep.subr.mxu0 0.0
    %721 = vmatpush1.msra.mxu0 %v687
    %722 = vmatprep.subr.mxu0 0.0
    %723 = vmatpush1.msra.mxu0 %v688
    %724 = vmatprep.subr.mxu0 0.0
    %725 = vmatpush1.msra.mxu0 %v689
    %726 = vmatprep.subr.mxu0 0.0
    %727 = vmatpush1.msra.mxu0 %v690
    %728 = vmatprep.subr.mxu0 0.0
    %729 = vmatpush1.msra.mxu0 %v691
    %730 = vmatprep.subr.mxu0 0.0
    %731 = vmatpush1.msra.mxu0 %v692
    %732 = vmatprep.subr.mxu0 0.0
    %733 = vmatpush1.msra.mxu0 %v693
    %734 = vmatprep.subr.mxu0 0.0
    %735 = vmatpush1.msra.mxu0 %v694
    %736 = vmatprep.subr.mxu0 0.0
    %737 = vmatpush1.msra.mxu0 %v695
    %738 = vmatprep.subr.mxu0 0.0
    %739 = vmatpush1.msra.mxu0 %v696
    %740 = vmatprep.subr.mxu0 0.0
    %741 = vmatpush1.msra.mxu0 %v697
    %742 = vmatprep.subr.mxu0 0.0
    %743 = vmatpush1.msra.mxu0 0.0
    %744 = vmatprep.subr.mxu0 0.0
    %745 = vmatpush1.msra.mxu0 0.0
    %746 = vmatprep.subr.mxu0 0.0
    %747 = vmatpush1.msra.mxu0 0.0
    %748 = vmatprep.subr.mxu0 0.0
    %749 = vmatpush1.msra.mxu0 0.0
    %750 = vmatprep.subr.mxu0 0.0
    %751 = vmatpush1.msra.mxu0 0.0
    %752 = vmatprep.subr.mxu0 0.0
    %753 = vmatpush1.msra.mxu0 0.0
    %754 = vmatprep.subr.mxu0 0.0
    %755 = vmatpush1.msra.mxu0 0.0
    %756 = vmatprep.subr.mxu0 0.0
    %757 = vmatpush1.msra.mxu0 0.0
    %758 = vmatprep.subr.mxu0 0.0
    %759 = vmatpush1.msra.mxu0 0.0
    %760 = vmatprep.subr.mxu0 0.0
    %761 = vmatpush1.msra.mxu0 0.0
    %762 = vmatprep.subr.mxu0 0.0
    %763 = vmatpush1.msra.mxu0 0.0
    %764 = vmatprep.subr.mxu0 0.0
    %765 = vmatpush1.msra.mxu0 0.0
    %766 = vmatprep.subr.mxu0 0.0
    %767 = vmatpush1.msra.mxu0 0.0
    %768 = vmatprep.subr.mxu0 0.0
    %769 = vmatpush1.msra.mxu0 0.0
    %770 = vmatprep.subr.mxu0 0.0
    %771 = vmatpush1.msra.mxu0 0.0
    %772 = vmatprep.subr.mxu0 0.0
    %773 = vmatpush1.msra.mxu0 0.0
    %774 = vmatprep.mubr.f32.mxu0 0.0
    %775 = vmatmul.mubr.f32.gmra.mrb[0].mxu0 %v702
    %v776 = vpop.f32.mrb[0].mxu0
    %v777 = vadd.f32 0.0, %v776
    %v778 = vpop.f32.mrb[0].mxu0
    %779 = vmatprep.mubr.f32.mxu0 0.0
    %780 = vmatmul.mubr.f32.gmra.mrb[0].mxu0 %v703
    %v781 = vpop.f32.mrb[0].mxu0
    %v782 = vadd.f32 0.0, %v781
    %v783 = vpop.f32.mrb[0].mxu0
    %784 = vdwg.mxu0
    %v785 = vmul.f32 %v702, %v702
    %v786 = vmul.f32 %v703, %v703
    %787 = vmatprep.subr.mxu0 0.0
    %788 = vmatpush1.msra.mxu0 %v682
    %789 = vmatprep.subr.mxu0 0.0
    %790 = vmatpush1.msra.mxu0 %v683
    %791 = vmatprep.subr.mxu0 0.0
    %792 = vmatpush1.msra.mxu0 %v684
    %793 = vmatprep.subr.mxu0 0.0
    %794 = vmatpush1.msra.mxu0 %v685
    %795 = vmatprep.subr.mxu0 0.0
    %796 = vmatpush1.msra.mxu0 %v686
    %797 = vmatprep.subr.mxu0 0.0
    %798 = vmatpush1.msra.mxu0 %v687
    %799 = vmatprep.subr.mxu0 0.0
    %800 = vmatpush1.msra.mxu0 %v688
    %801 = vmatprep.subr.mxu0 0.0
    %802 = vmatpush1.msra.mxu0 %v689
    %803 = vmatprep.subr.mxu0 0.0
    %804 = vmatpush1.msra.mxu0 %v690
    %805 = vmatprep.subr.mxu0 0.0
    %806 = vmatpush1.msra.mxu0 %v691
    %807 = vmatprep.subr.mxu0 0.0
    %808 = vmatpush1.msra.mxu0 %v692
    %809 = vmatprep.subr.mxu0 0.0
    %810 = vmatpush1.msra.mxu0 %v693
    %811 = vmatprep.subr.mxu0 0.0
    %812 = vmatpush1.msra.mxu0 %v694
    %813 = vmatprep.subr.mxu0 0.0
    %814 = vmatpush1.msra.mxu0 %v695
    %815 = vmatprep.subr.mxu0 0.0
    %816 = vmatpush1.msra.mxu0 %v696
    %817 = vmatprep.subr.mxu0 0.0
    %818 = vmatpush1.msra.mxu0 %v697
    %819 = vmatprep.subr.mxu0 0.0
    %820 = vmatpush1.msra.mxu0 0.0
    %821 = vmatprep.subr.mxu0 0.0
    %822 = vmatpush1.msra.mxu0 0.0
    %823 = vmatprep.subr.mxu0 0.0
    %824 = vmatpush1.msra.mxu0 0.0
    %825 = vmatprep.subr.mxu0 0.0
    %826 = vmatpush1.msra.mxu0 0.0
    %827 = vmatprep.subr.mxu0 0.0
    %828 = vmatpush1.msra.mxu0 0.0
    %829 = vmatprep.subr.mxu0 0.0
    %830 = vmatpush1.msra.mxu0 0.0
    %831 = vmatprep.subr.mxu0 0.0
    %832 = vmatpush1.msra.mxu0 0.0
    %833 = vmatprep.subr.mxu0 0.0
    %834 = vmatpush1.msra.mxu0 0.0
    %835 = vmatprep.subr.mxu0 0.0
    %836 = vmatpush1.msra.mxu0 0.0
    %837 = vmatprep.subr.mxu0 0.0
    %838 = vmatpush1.msra.mxu0 0.0
    %839 = vmatprep.subr.mxu0 0.0
    %840 = vmatpush1.msra.mxu0 0.0
    %841 = vmatprep.subr.mxu0 0.0
    %842 = vmatpush1.msra.mxu0 0.0
    %843 = vmatprep.subr.mxu0 0.0
    %844 = vmatpush1.msra.mxu0 0.0
    %845 = vmatprep.subr.mxu0 0.0
    %846 = vmatpush1.msra.mxu0 0.0
    %847 = vmatprep.subr.mxu0 0.0
    %848 = vmatpush1.msra.mxu0 0.0
    %849 = vmatprep.subr.mxu0 0.0
    %850 = vmatpush1.msra.mxu0 0.0
    %851 = vmatprep.mubr.f32.mxu0 0.0
    %852 = vmatmul.mubr.f32.gmra.mrb[0].mxu0 %v785
    %v853 = vpop.f32.mrb[0].mxu0
    %v854 = vadd.f32 0.0, %v853
    %v855 = vpop.f32.mrb[0].mxu0
    %856 = vmatprep.mubr.f32.mxu0 0.0
    %857 = vmatmul.mubr.f32.gmra.mrb[0].mxu0 %v786
    %v858 = vpop.f32.mrb[0].mxu0
    %v859 = vadd.f32 0.0, %v858
    %v860 = vpop.f32.mrb[0].mxu0
    %861 = vdwg.mxu0
    %v862 = vmul.f32 %v777, %v777
    %v863 = vmul.f32 %v782, %v782
    %v864 = vsub.f32 %v854, %v862
    %v865 = vsub.f32 %v859, %v863
    %v866 = vsub.f32 %v702, %v777
    %v867 = vsub.f32 %v703, %v782
    %v868 = vadd.f32 %v864, 1e-05
    %v869 = vadd.f32 %v865, 1e-05
    %v870 = vrsqrt.pop %v868
    %v871 = vrsqrt.pop %v869
    %v872 = vmul.f32 %v866, %v870
    %v873 = vmul.f32 %v867, %v871
    %v874 = vmul.f32 %v872, %v705
    %v875 = vmul.f32 %v873, %v706
    %v876 = vadd.f32 %v874, %v708
    %v877 = vadd.f32 %v875, %v709
    %v878 = vld [vmem:[#allocation2 + $0x20] sm:$0xff]
    %v879 = vld [vmem:[#allocation2 + $0x58] sm:$0xff]
    %v880 = vld [vmem:[#allocation2 + $0x90] sm:$0xff]
    %v881 = vld [vmem:[#allocation2 + $0xc8] sm:$0xff]
    %v882 = vld [vmem:[#allocation2 + $0x100] sm:$0xff]
    %v883 = vld [vmem:[#allocation2 + $0x138] sm:$0xff]
    %v884 = vld [vmem:[#allocation2 + $0x170] sm:$0xff]
    %v885 = vld [vmem:[#allocation2 + $0x1a8] sm:$0xff]
    %v886 = vld [vmem:[#allocation2 + $0x1e0] sm:$0xff]
    %v887 = vld [vmem:[#allocation2 + $0x218] sm:$0xff]
    %v888 = vld [vmem:[#allocation2 + $0x250] sm:$0xff]
    %v889 = vld [vmem:[#allocation2 + $0x288] sm:$0xff]
    %v890 = vld [vmem:[#allocation2 + $0x2c0] sm:$0xff]
    %v891 = vld [vmem:[#allocation2 + $0x2f8] sm:$0xff]
    %v892 = vld [vmem:[#allocation2 + $0x330] sm:$0xff]
    %v893 = vld [vmem:[#allocation2 + $0x368] sm:$0xff]
    %894 = vmatprep.subr.mxu0 0.0
    %895 = vmatpush1.msra.mxu0 %v878
    %896 = vmatprep.subr.mxu0 0.0
    %897 = vmatpush1.msra.mxu0 %v879
    %898 = vmatprep.subr.mxu0 0.0
    %899 = vmatpush1.msra.mxu0 %v880
    %900 = vmatprep.subr.mxu0 0.0
    %901 = vmatpush1.msra.mxu0 %v881
    %902 = vmatprep.subr.mxu0 0.0
    %903 = vmatpush1.msra.mxu0 %v882
    %904 = vmatprep.subr.mxu0 0.0
    %905 = vmatpush1.msra.mxu0 %v883
    %906 = vmatprep.subr.mxu0 0.0
    %907 = vmatpush1.msra.mxu0 %v884
    %908 = vmatprep.subr.mxu0 0.0
    %909 = vmatpush1.msra.mxu0 %v885
    %910 = vmatprep.subr.mxu0 0.0
    %911 = vmatpush1.msra.mxu0 %v886
    %912 = vmatprep.subr.mxu0 0.0
    %913 = vmatpush1.msra.mxu0 %v887
    %914 = vmatprep.subr.mxu0 0.0
    %915 = vmatpush1.msra.mxu0 %v888
    %916 = vmatprep.subr.mxu0 0.0
    %917 = vmatpush1.msra.mxu0 %v889
    %918 = vmatprep.subr.mxu0 0.0
    %919 = vmatpush1.msra.mxu0 %v890
    %920 = vmatprep.subr.mxu0 0.0
    %921 = vmatpush1.msra.mxu0 %v891
    %922 = vmatprep.subr.mxu0 0.0
    %923 = vmatpush1.msra.mxu0 %v892
    %924 = vmatprep.subr.mxu0 0.0
    %925 = vmatpush1.msra.mxu0 %v893
    %926 = vmatprep.subr.mxu0 0.0
    %927 = vmatpush1.msra.mxu0 0.0
    %928 = vmatprep.subr.mxu0 0.0
    %929 = vmatpush1.msra.mxu0 0.0
    %930 = vmatprep.subr.mxu0 0.0
    %931 = vmatpush1.msra.mxu0 0.0
    %932 = vmatprep.subr.mxu0 0.0
    %933 = vmatpush1.msra.mxu0 0.0
    %934 = vmatprep.subr.mxu0 0.0
    %935 = vmatpush1.msra.mxu0 0.0
    %936 = vmatprep.subr.mxu0 0.0
    %937 = vmatpush1.msra.mxu0 0.0
    %938 = vmatprep.subr.mxu0 0.0
    %939 = vmatpush1.msra.mxu0 0.0
    %940 = vmatprep.subr.mxu0 0.0
    %941 = vmatpush1.msra.mxu0 0.0
    %942 = vmatprep.subr.mxu0 0.0
    %943 = vmatpush1.msra.mxu0 0.0
    %944 = vmatprep.subr.mxu0 0.0
    %945 = vmatpush1.msra.mxu0 0.0
    %946 = vmatprep.subr.mxu0 0.0
    %947 = vmatpush1.msra.mxu0 0.0
    %948 = vmatprep.subr.mxu0 0.0
    %949 = vmatpush1.msra.mxu0 0.0
    %950 = vmatprep.subr.mxu0 0.0
    %951 = vmatpush1.msra.mxu0 0.0
    %952 = vmatprep.subr.mxu0 0.0
    %953 = vmatpush1.msra.mxu0 0.0
    %954 = vmatprep.subr.mxu0 0.0
    %955 = vmatpush1.msra.mxu0 0.0
    %956 = vmatprep.subr.mxu0 0.0
    %957 = vmatpush1.msra.mxu0 0.0
    %958 = vmatprep.mubr.f32.mxu0 0.0
    %959 = vmatmul.mubr.f32.gmra.mrb[0].mxu0 %v876
    %v960 = vpop.f32.mrb[0].mxu0
    %v961 = vadd.f32 0.0, %v960
    %v962 = vpop.f32.mrb[0].mxu0
    %963 = vmatprep.mubr.f32.mxu0 0.0
    %964 = vmatmul.mubr.f32.gmra.mrb[0].mxu0 %v877
    %v965 = vpop.f32.mrb[0].mxu0
    %v966 = vadd.f32 0.0, %v965
    %v967 = vpop.f32.mrb[0].mxu0
    %968 = vdwg.mxu0
    %v969 = vmax.f32 %v961, 0.0
    %v970 = vmax.f32 %v966, 0.0
    %v971 = vld [vmem:[#allocation2 + $0x28] sm:$0xff]
    %v972 = vld [vmem:[#allocation2 + $0x60] sm:$0xff]
    %v973 = vld [vmem:[#allocation2 + $0x98] sm:$0xff]
    %v974 = vld [vmem:[#allocation2 + $0xd0] sm:$0xff]
    %v975 = vld [vmem:[#allocation2 + $0x108] sm:$0xff]
    %v976 = vld [vmem:[#allocation2 + $0x140] sm:$0xff]
    %v977 = vld [vmem:[#allocation2 + $0x178] sm:$0xff]
    %v978 = vld [vmem:[#allocation2 + $0x1b0] sm:$0xff]
    %v979 = vld [vmem:[#allocation2 + $0x1e8] sm:$0xff]
    %v980 = vld [vmem:[#allocation2 + $0x220] sm:$0xff]
    %v981 = vld [vmem:[#allocation2 + $0x258] sm:$0xff]
    %v982 = vld [vmem:[#allocation2 + $0x290] sm:$0xff]
    %v983 = vld [vmem:[#allocation2 + $0x2c8] sm:$0xff]
    %v984 = vld [vmem:[#allocation2 + $0x300] sm:$0xff]
    %v985 = vld [vmem:[#allocation2 + $0x338] sm:$0xff]
    %v986 = vld [vmem:[#allocation2 + $0x370] sm:$0xff]
    %987 = vmatprep.subr.mxu0 0.0
    %988 = vmatpush1.msra.mxu0 %v971
    %989 = vmatprep.subr.mxu0 0.0
    %990 = vmatpush1.msra.mxu0 %v972
    %991 = vmatprep.subr.mxu0 0.0
    %992 = vmatpush1.msra.mxu0 %v973
    %993 = vmatprep.subr.mxu0 0.0
    %994 = vmatpush1.msra.mxu0 %v974
    %995 = vmatprep.subr.mxu0 0.0
    %996 = vmatpush1.msra.mxu0 %v975
    %997 = vmatprep.subr.mxu0 0.0
    %998 = vmatpush1.msra.mxu0 %v976
    %999 = vmatprep.subr.mxu0 0.0
    %1000 = vmatpush1.msra.mxu0 %v977
    %1001 = vmatprep.subr.mxu0 0.0
    %1002 = vmatpush1.msra.mxu0 %v978
    %1003 = vmatprep.subr.mxu0 0.0
    %1004 = vmatpush1.msra.mxu0 %v979
    %1005 = vmatprep.subr.mxu0 0.0
    %1006 = vmatpush1.msra.mxu0 %v980
    %1007 = vmatprep.subr.mxu0 0.0
    %1008 = vmatpush1.msra.mxu0 %v981
    %1009 = vmatprep.subr.mxu0 0.0
    %1010 = vmatpush1.msra.mxu0 %v982
    %1011 = vmatprep.subr.mxu0 0.0
    %1012 = vmatpush1.msra.mxu0 %v983
    %1013 = vmatprep.subr.mxu0 0.0
    %1014 = vmatpush1.msra.mxu0 %v984
    %1015 = vmatprep.subr.mxu0 0.0
    %1016 = vmatpush1.msra.mxu0 %v985
    %1017 = vmatprep.subr.mxu0 0.0
    %1018 = vmatpush1.msra.mxu0 %v986
    %1019 = vmatprep.subr.mxu0 0.0
    %1020 = vmatpush1.msra.mxu0 0.0
    %1021 = vmatprep.subr.mxu0 0.0
    %1022 = vmatpush1.msra.mxu0 0.0
    %1023 = vmatprep.subr.mxu0 0.0
    %1024 = vmatpush1.msra.mxu0 0.0
    %1025 = vmatprep.subr.mxu0 0.0
    %1026 = vmatpush1.msra.mxu0 0.0
    %1027 = vmatprep.subr.mxu0 0.0
    %1028 = vmatpush1.msra.mxu0 0.0
    %1029 = vmatprep.subr.mxu0 0.0
    %1030 = vmatpush1.msra.mxu0 0.0
    %1031 = vmatprep.subr.mxu0 0.0
    %1032 = vmatpush1.msra.mxu0 0.0
    %1033 = vmatprep.subr.mxu0 0.0
    %1034 = vmatpush1.msra.mxu0 0.0
    %1035 = vmatprep.subr.mxu0 0.0
    %1036 = vmatpush1.msra.mxu0 0.0
    %1037 = vmatprep.subr.mxu0 0.0
    %1038 = vmatpush1.msra.mxu0 0.0
    %1039 = vmatprep.subr.mxu0 0.0
    %1040 = vmatpush1.msra.mxu0 0.0
    %1041 = vmatprep.subr.mxu0 0.0
    %1042 = vmatpush1.msra.mxu0 0.0
    %1043 = vmatprep.subr.mxu0 0.0
    %1044 = vmatpush1.msra.mxu0 0.0
    %1045 = vmatprep.subr.mxu0 0.0
    %1046 = vmatpush1.msra.mxu0 0.0
    %1047 = vmatprep.subr.mxu0 0.0
    %1048 = vmatpush1.msra.mxu0 0.0
    %1049 = vmatprep.subr.mxu0 0.0
    %1050 = vmatpush1.msra.mxu0 0.0
    %1051 = vmatprep.mubr.f32.mxu0 0.0
    %1052 = vmatmul.mubr.f32.gmra.mrb[0].mxu0 %v969
    %v1053 = vpop.f32.mrb[0].mxu0
    %v1054 = vadd.f32 0.0, %v1053
    %v1055 = vpop.f32.mrb[0].mxu0
    %1056 = vmatprep.mubr.f32.mxu0 0.0
    %1057 = vmatmul.mubr.f32.gmra.mrb[0].mxu0 %v970
    %v1058 = vpop.f32.mrb[0].mxu0
    %v1059 = vadd.f32 0.0, %v1058
    %v1060 = vpop.f32.mrb[0].mxu0
    %1061 = vdwg.mxu0
    %v1062 = vadd.f32 %v876, %v1054
    %v1063 = vadd.f32 %v877, %v1059
    %s1064 = scalar_lea.vmem [#allocation5], 48
    %v1065 = vld [vmem:[%s1064] sm:$0xff]
    %v1066 = vld [vmem:[%s1064 + $0x8] sm:$0xff]
    %s1067 = scalar_lea.vmem [#allocation5], 64
    %v1068 = vld [vmem:[%s1067] sm:$0xff]
    %v1069 = vld [vmem:[%s1067 + $0x8] sm:$0xff]
    %1070 = vmatprep.subr.mxu0 0.0
    %1071 = vmatpush1.msra.mxu0 %v682
    %1072 = vmatprep.subr.mxu0 0.0
    %1073 = vmatpush1.msra.mxu0 %v683
    %1074 = vmatprep.subr.mxu0 0.0
    %1075 = vmatpush1.msra.mxu0 %v684
    %1076 = vmatprep.subr.mxu0 0.0
    %1077 = vmatpush1.msra.mxu0 %v685
    %1078 = vmatprep.subr.mxu0 0.0
    %1079 = vmatpush1.msra.mxu0 %v686
    %1080 = vmatprep.subr.mxu0 0.0
    %1081 = vmatpush1.msra.mxu0 %v687
    %1082 = vmatprep.subr.mxu0 0.0
    %1083 = vmatpush1.msra.mxu0 %v688
    %1084 = vmatprep.subr.mxu0 0.0
    %1085 = vmatpush1.msra.mxu0 %v689
    %1086 = vmatprep.subr.mxu0 0.0
    %1087 = vmatpush1.msra.mxu0 %v690
    %1088 = vmatprep.subr.mxu0 0.0
    %1089 = vmatpush1.msra.mxu0 %v691
    %1090 = vmatprep.subr.mxu0 0.0
    %1091 = vmatpush1.msra.mxu0 %v692
    %1092 = vmatprep.subr.mxu0 0.0
    %1093 = vmatpush1.msra.mxu0 %v693
    %1094 = vmatprep.subr.mxu0 0.0
    %1095 = vmatpush1.msra.mxu0 %v694
    %1096 = vmatprep.subr.mxu0 0.0
    %1097 = vmatpush1.msra.mxu0 %v695
    %1098 = vmatprep.subr.mxu0 0.0
    %1099 = vmatpush1.msra.mxu0 %v696
    %1100 = vmatprep.subr.mxu0 0.0
    %1101 = vmatpush1.msra.mxu0 %v697
    %1102 = vmatprep.subr.mxu0 0.0
    %1103 = vmatpush1.msra.mxu0 0.0
    %1104 = vmatprep.subr.mxu0 0.0
    %1105 = vmatpush1.msra.mxu0 0.0
    %1106 = vmatprep.subr.mxu0 0.0
    %1107 = vmatpush1.msra.mxu0 0.0
    %1108 = vmatprep.subr.mxu0 0.0
    %1109 = vmatpush1.msra.mxu0 0.0
    %1110 = vmatprep.subr.mxu0 0.0
    %1111 = vmatpush1.msra.mxu0 0.0
    %1112 = vmatprep.subr.mxu0 0.0
    %1113 = vmatpush1.msra.mxu0 0.0
    %1114 = vmatprep.subr.mxu0 0.0
    %1115 = vmatpush1.msra.mxu0 0.0
    %1116 = vmatprep.subr.mxu0 0.0
    %1117 = vmatpush1.msra.mxu0 0.0
    %1118 = vmatprep.subr.mxu0 0.0
    %1119 = vmatpush1.msra.mxu0 0.0
    %1120 = vmatprep.subr.mxu0 0.0
    %1121 = vmatpush1.msra.mxu0 0.0
    %1122 = vmatprep.subr.mxu0 0.0
    %1123 = vmatpush1.msra.mxu0 0.0
    %1124 = vmatprep.subr.mxu0 0.0
    %1125 = vmatpush1.msra.mxu0 0.0
    %1126 = vmatprep.subr.mxu0 0.0
    %1127 = vmatpush1.msra.mxu0 0.0
    %1128 = vmatprep.subr.mxu0 0.0
    %1129 = vmatpush1.msra.mxu0 0.0
    %1130 = vmatprep.subr.mxu0 0.0
    %1131 = vmatpush1.msra.mxu0 0.0
    %1132 = vmatprep.subr.mxu0 0.0
    %1133 = vmatpush1.msra.mxu0 0.0
    %1134 = vmatprep.mubr.f32.mxu0 0.0
    %1135 = vmatmul.mubr.f32.gmra.mrb[0].mxu0 %v1062
    %v1136 = vpop.f32.mrb[0].mxu0
    %v1137 = vadd.f32 0.0, %v1136
    %v1138 = vpop.f32.mrb[0].mxu0
    %1139 = vmatprep.mubr.f32.mxu0 0.0
    %1140 = vmatmul.mubr.f32.gmra.mrb[0].mxu0 %v1063
    %v1141 = vpop.f32.mrb[0].mxu0
    %v1142 = vadd.f32 0.0, %v1141
    %v1143 = vpop.f32.mrb[0].mxu0
    %1144 = vdwg.mxu0
    %v1145 = vmul.f32 %v1062, %v1062
    %v1146 = vmul.f32 %v1063, %v1063
    %1147 = vmatprep.subr.mxu0 0.0
    %1148 = vmatpush1.msra.mxu0 %v682
    %1149 = vmatprep.subr.mxu0 0.0
    %1150 = vmatpush1.msra.mxu0 %v683
    %1151 = vmatprep.subr.mxu0 0.0
    %1152 = vmatpush1.msra.mxu0 %v684
    %1153 = vmatprep.subr.mxu0 0.0
    %1154 = vmatpush1.msra.mxu0 %v685
    %1155 = vmatprep.subr.mxu0 0.0
    %1156 = vmatpush1.msra.mxu0 %v686
    %1157 = vmatprep.subr.mxu0 0.0
    %1158 = vmatpush1.msra.mxu0 %v687
    %1159 = vmatprep.subr.mxu0 0.0
    %1160 = vmatpush1.msra.mxu0 %v688
    %1161 = vmatprep.subr.mxu0 0.0
    %1162 = vmatpush1.msra.mxu0 %v689
    %1163 = vmatprep.subr.mxu0 0.0
    %1164 = vmatpush1.msra.mxu0 %v690
    %1165 = vmatprep.subr.mxu0 0.0
    %1166 = vmatpush1.msra.mxu0 %v691
    %1167 = vmatprep.subr.mxu0 0.0
    %1168 = vmatpush1.msra.mxu0 %v692
    %1169 = vmatprep.subr.mxu0 0.0
    %1170 = vmatpush1.msra.mxu0 %v693
    %1171 = vmatprep.subr.mxu0 0.0
    %1172 = vmatpush1.msra.mxu0 %v694
    %1173 = vmatprep.subr.mxu0 0.0
    %1174 = vmatpush1.msra.mxu0 %v695
    %1175 = vmatprep.subr.mxu0 0.0
    %1176 = vmatpush1.msra.mxu0 %v696
    %1177 = vmatprep.subr.mxu0 0.0
    %1178 = vmatpush1.msra.mxu0 %v697
    %1179 = vmatprep.subr.mxu0 0.0
    %1180 = vmatpush1.msra.mxu0 0.0
    %1181 = vmatprep.subr.mxu0 0.0
    %1182 = vmatpush1.msra.mxu0 0.0
    %1183 = vmatprep.subr.mxu0 0.0
    %1184 = vmatpush1.msra.mxu0 0.0
    %1185 = vmatprep.subr.mxu0 0.0
    %1186 = vmatpush1.msra.mxu0 0.0
    %1187 = vmatprep.subr.mxu0 0.0
    %1188 = vmatpush1.msra.mxu0 0.0
    %1189 = vmatprep.subr.mxu0 0.0
    %1190 = vmatpush1.msra.mxu0 0.0
    %1191 = vmatprep.subr.mxu0 0.0
    %1192 = vmatpush1.msra.mxu0 0.0
    %1193 = vmatprep.subr.mxu0 0.0
    %1194 = vmatpush1.msra.mxu0 0.0
    %1195 = vmatprep.subr.mxu0 0.0
    %1196 = vmatpush1.msra.mxu0 0.0
    %1197 = vmatprep.subr.mxu0 0.0
    %1198 = vmatpush1.msra.mxu0 0.0
    %1199 = vmatprep.subr.mxu0 0.0
    %1200 = vmatpush1.msra.mxu0 0.0
    %1201 = vmatprep.subr.mxu0 0.0
    %1202 = vmatpush1.msra.mxu0 0.0
    %1203 = vmatprep.subr.mxu0 0.0
    %1204 = vmatpush1.msra.mxu0 0.0
    %1205 = vmatprep.subr.mxu0 0.0
    %1206 = vmatpush1.msra.mxu0 0.0
    %1207 = vmatprep.subr.mxu0 0.0
    %1208 = vmatpush1.msra.mxu0 0.0
    %1209 = vmatprep.subr.mxu0 0.0
    %1210 = vmatpush1.msra.mxu0 0.0
    %1211 = vmatprep.mubr.f32.mxu0 0.0
    %1212 = vmatmul.mubr.f32.gmra.mrb[0].mxu0 %v1145
    %v1213 = vpop.f32.mrb[0].mxu0
    %v1214 = vadd.f32 0.0, %v1213
    %v1215 = vpop.f32.mrb[0].mxu0
    %1216 = vmatprep.mubr.f32.mxu0 0.0
    %1217 = vmatmul.mubr.f32.gmra.mrb[0].mxu0 %v1146
    %v1218 = vpop.f32.mrb[0].mxu0
    %v1219 = vadd.f32 0.0, %v1218
    %v1220 = vpop.f32.mrb[0].mxu0
    %1221 = vdwg.mxu0
    %v1222 = vmul.f32 %v1137, %v1137
    %v1223 = vmul.f32 %v1142, %v1142
    %v1224 = vsub.f32 %v1214, %v1222
    %v1225 = vsub.f32 %v1219, %v1223
    %v1226 = vsub.f32 %v1062, %v1137
    %v1227 = vsub.f32 %v1063, %v1142
    %v1228 = vadd.f32 %v1224, 1e-05
    %v1229 = vadd.f32 %v1225, 1e-05
    %v1230 = vrsqrt.pop %v1228
    %v1231 = vrsqrt.pop %v1229
    %v1232 = vmul.f32 %v1226, %v1230
    %v1233 = vmul.f32 %v1227, %v1231
    %v1234 = vmul.f32 %v1232, %v1065
    %v1235 = vmul.f32 %v1233, %v1066
    %v1236 = vadd.f32 %v1234, %v1068
    %v1237 = vadd.f32 %v1235, %v1069
    %1238 = vst [vmem:[#allocation7] sm:$0xff] %v1236
    %1239 = vst [vmem:[#allocation7 + $0x8] sm:$0xff] %v1237
    // Predicated region
    $region22: #{transformer_encoder_layer.1} parent=1 // pred_check
      _
    $region23: #{transformer_encoder_layer.1} parent=1 // pred_check_branch
      %1241 = sbr.rel (0) target = $region25
    $region24: #{transformer_encoder_layer.1} parent=1 // pred_region
      %s1243 = ssub.s32 256, 256
      %1244 = vsyncadd [#allocation4], %s1243
      %s1245 = sshll.u32 [#allocation7], 4
      %s1246 = int_to_ptr.vmem [resolvable:$true] %s1245
      %1251 = dma.vmem_to_hbm [thread:$0]  %s1246, 256, %s3, [#allocation4], 128, 128, 8
    $region25: #{transformer_encoder_layer.1} parent=1 // pred_fallthru
      _
    // Predicated region
    $region26: #{transformer_encoder_layer.1} parent=1 // pred_check
      _
    $region27: #{transformer_encoder_layer.1} parent=1 // pred_check_branch
      %1253 = sbr.rel (0) target = $region29
    $region28: #{transformer_encoder_layer.1} parent=1 // pred_region
      %1254 = dma.done [#allocation4], 256
    $region29: #{transformer_encoder_layer.1} parent=1 // pred_fallthru
      _
    %1255 = vsyncpa [#allocation3], 1
    %1256 = vsyncpa [#allocation6], 1
    %1257 = vsyncpa [#allocation4], 1

</llo_original>
